<compile_context>
chip_gen: v7x
topology: tpu7x:2x2x1
jax: 0.10.0
libtpu: 0.0.40
codegen_flags: <defaults>
</compile_context>

<pallas_src>
from functools import reduce

import jax
import jax.numpy as jnp
from jax.experimental import pallas as pl
from jax.experimental.pallas import tpu as pltpu


BN_EPS = 1e-5
LEAKY_SLOPE = 0.2

H1, H2, H3, H4 = 128, 256, 512, 1024

# Offsets of the packed (1, _VEC_TOTAL) bias/gamma/beta vector.  All offsets
# and widths are multiples of 128 -> lane-aligned static slices.
_OFF_B1 = 0
_OFF_B2 = _OFF_B1 + H1
_OFF_G2 = _OFF_B2 + H2
_OFF_T2 = _OFF_G2 + H2
_OFF_B3 = _OFF_T2 + H2
_OFF_G3 = _OFF_B3 + H3
_OFF_T3 = _OFF_G3 + H3
_OFF_B4 = _OFF_T3 + H3
_OFF_G4 = _OFF_B4 + H4
_OFF_T4 = _OFF_G4 + H4
_VEC_TOTAL = _OFF_T4 + H4          # 5504 = 43 * 128


def _hidden_stack_kernel(z_ref, w1_ref, w2_ref, w3_ref, w4_ref, vec_ref,
                         h4_ref):
    """Hidden layers 1-4 with full-batch training-mode BatchNorm."""

    def vec(off, width):
        return vec_ref[:, off:off + width]          # (1, width) f32

    def leaky(x):
        return jnp.maximum(x, LEAKY_SLOPE * x)      # mul + max (no select)

    def matmul(x, w_ref):
        # bf16 x bf16 on the MXU, f32 accumulation.
        return jnp.dot(x.astype(jnp.bfloat16), w_ref[...],
                       preferred_element_type=jnp.float32)

    def batch_norm(x, g, t):
        # Training-mode BatchNorm1d (biased variance), folded into one FMA.
        mu = jnp.mean(x, axis=0, keepdims=True)
        var = jnp.mean(x * x, axis=0, keepdims=True) - mu * mu
        var = jnp.maximum(var, 0.0)                 # guard f32 cancellation
        scale = g * jax.lax.rsqrt(var + BN_EPS)
        shift = t - mu * scale
        return x * scale + shift

    h = leaky(matmul(z_ref[...], w1_ref) + vec(_OFF_B1, H1))
    h = leaky(batch_norm(matmul(h, w2_ref) + vec(_OFF_B2, H2),
                         vec(_OFF_G2, H2), vec(_OFF_T2, H2)))
    h = leaky(batch_norm(matmul(h, w3_ref) + vec(_OFF_B3, H3),
                         vec(_OFF_G3, H3), vec(_OFF_T3, H3)))
    h = leaky(batch_norm(matmul(h, w4_ref) + vec(_OFF_B4, H4),
                         vec(_OFF_G4, H4), vec(_OFF_T4, H4)))
    h4_ref[...] = h.astype(jnp.bfloat16)


def _final_layer_kernel(h4_ref, w5_ref, b5_ref, out_ref):
    """One output-column tile of Linear(1024, numel_pad) + Tanh."""
    y = jnp.dot(h4_ref[...], w5_ref[...], preferred_element_type=jnp.float32)
    out_ref[...] = jnp.tanh(y + b5_ref[...]).astype(out_ref.dtype)


def init_generator_params(key, input_dim, numel):
    """Mirror PyTorch init: kaiming_normal_ (fan_in, leaky_relu gain sqrt(2)),
    zero bias; BatchNorm gamma=1, beta=0.  Weights stored (in, out), f32."""
    dims = [input_dim, H1, H2, H3, H4, numel]
    keys = jax.random.split(key, len(dims) - 1)
    params = {}
    for i, (fan_in, fan_out) in enumerate(zip(dims[:-1], dims[1:]), start=1):
        std = (2.0 / fan_in) ** 0.5
        params[f"w{i}"] = (jax.random.normal(keys[i - 1], (fan_in, fan_out),
                                             jnp.float32) * std)
        params[f"b{i}"] = jnp.zeros((1, fan_out), jnp.float32)
        if i in (2, 3, 4):
            params[f"g{i}"] = jnp.ones((1, fan_out), jnp.float32)
            params[f"t{i}"] = jnp.zeros((1, fan_out), jnp.float32)
    return params


def _vmem_cap_bytes():
    """Generation-aware VMEM ceiling (80% of physical capacity per core)."""
    try:
        cap = int(pltpu.get_tpu_info().vmem_capacity_bytes)
    except Exception:                               # not on TPU / query failed
        cap = 128 << 20
    return int(0.8 * cap)


def _vmem_budget(footprint_bytes, cap):
    # 2x safety on the estimated footprint, 32 MiB floor (default scoped
    # limit), generation-aware ceiling.
    return int(min(max(2 * footprint_bytes + (8 << 20), 32 << 20), cap))


def generator_forward(z, params, img_size, out_dtype=jnp.float32):
    """z: (B, input_dim) float32 -> (B, *img_size) out_dtype."""
    batch, input_dim = z.shape
    numel = reduce(lambda a, b: a * b, img_size)

    # Lane-dense tiling of the final Linear's output columns: guarantee the
    # large-tile regime (tn >= 512) whenever numel allows it.
    pad128 = ((numel + 127) // 128) * 128
    if pad128 <= 512:
        numel_pad, tn = pad128, pad128
    else:
        numel_pad = ((numel + 511) // 512) * 512
        tn = 512
    n_tiles = numel_pad // tn

    bf16, f32 = jnp.bfloat16, jnp.float32
    cap = _vmem_cap_bytes()

    z_bf = z.astype(bf16)
    w1 = params["w1"].astype(bf16)
    w2 = params["w2"].astype(bf16)
    w3 = params["w3"].astype(bf16)
    w4 = params["w4"].astype(bf16)
    vec = jnp.concatenate(
        [params[k] for k in ("b1", "b2", "g2", "t2",
                             "b3", "g3", "t3",
                             "b4", "g4", "t4")], axis=1).astype(f32)

    w5 = params["w5"].astype(bf16)
    b5 = params["b5"].astype(f32)
    if numel_pad != numel:
        w5 = jnp.pad(w5, ((0, 0), (0, numel_pad - numel)))
        b5 = jnp.pad(b5, ((0, 0), (0, numel_pad - numel)))
    # Pre-block W5 so each grid tile is a single contiguous HBM transfer.
    w5_blk = w5.reshape(H4, n_tiles, tn).transpose(1, 0, 2)   # (n_tiles,H4,tn)

    # ---- Call 1: hidden stack (single invocation, full-batch BN stats) ----
    hidden_footprint = (
        batch * input_dim * 2
        + (input_dim * H1 + H1 * H2 + H2 * H3 + H3 * H4) * 2
        + _VEC_TOTAL * 4
        + batch * H4 * 2                     # h4 output
        + 6 * batch * H4 * 4)                # f32 activation temporaries
    h4 = pl.pallas_call(
        _hidden_stack_kernel,
        out_shape=jax.ShapeDtypeStruct((batch, H4), bf16),
        compiler_params=pltpu.CompilerParams(
            vmem_limit_bytes=_vmem_budget(hidden_footprint, cap)),
    )(z_bf, w1, w2, w3, w4, vec)

    # ---- Call 2: column-streamed final Linear + Tanh ("parallel" grid) ----
    final_footprint = (
        2 * batch * H4 * 2                   # resident h4 (double-buffered)
        + 2 * H4 * tn * 2                    # streamed W5 tiles
        + 2 * tn * 4                         # streamed b5 tiles
        + 2 * batch * tn * 4                 # output tiles
        + 4 * batch * tn * 4)                # f32 temporaries
    flat = pl.pallas_call(
        _final_layer_kernel,
        out_shape=jax.ShapeDtypeStruct((batch, numel_pad), out_dtype),
        grid_spec=pltpu.PrefetchScalarGridSpec(
            num_scalar_prefetch=0,
            grid=(n_tiles,),
            in_specs=[
                # h4 resident across grid steps (constant index map).
                pl.BlockSpec((batch, H4), lambda j: (0, 0)),
                # Contiguous pre-blocked W5 tile.
                pl.BlockSpec((pl.Squeezed(), H4, tn), lambda j: (j, 0, 0)),
                pl.BlockSpec((1, tn), lambda j: (0, j)),
            ],
            out_specs=pl.BlockSpec((batch, tn), lambda j: (0, j)),
        ),
        compiler_params=pltpu.CompilerParams(
            dimension_semantics=("parallel",),   # v7x: split columns over TCs
            vmem_limit_bytes=_vmem_budget(final_footprint, cap),
        ),
    )(h4, w5_blk, b5)

    if numel_pad != numel:                   # skip the copy when already dense
        flat = flat[:, :numel]
    return flat.reshape((batch,) + tuple(img_size))


def generator_reference(z, params, img_size):
    """Pure-JAX f32 reference of the PyTorch forward (training-mode BN)."""
    hp = jax.lax.Precision.HIGHEST

    def leaky(x):
        return jnp.where(x >= 0, x, LEAKY_SLOPE * x)

    def bn(x, g, t):
        mu = jnp.mean(x, axis=0, keepdims=True)
        var = jnp.mean((x - mu) ** 2, axis=0, keepdims=True)
        return (x - mu) / jnp.sqrt(var + BN_EPS) * g + t

    p = params
    h = leaky(jnp.dot(z, p["w1"], precision=hp) + p["b1"])
    h = leaky(bn(jnp.dot(h, p["w2"], precision=hp) + p["b2"], p["g2"], p["t2"]))
    h = leaky(bn(jnp.dot(h, p["w3"], precision=hp) + p["b3"], p["g3"], p["t3"]))
    h = leaky(bn(jnp.dot(h, p["w4"], precision=hp) + p["b4"], p["g4"], p["t4"]))
    y = jnp.tanh(jnp.dot(h, p["w5"], precision=hp) + p["b5"])
    return y.reshape((z.shape[0],) + tuple(img_size))


if __name__ == "__main__":
    # MLP-consistent small shapes: latent dim 32, image (1, 28, 28) -> numel 784.
    # (numel pads to 1024 -> tn=512, 2 column tiles; exercises the streamed
    #  multi-tile path and the padded-column slice.)
    batch = 8
    input_dim = 32
    img_size = (1, 28, 28)
    numel = reduce(lambda a, b: a * b, img_size)

    key = jax.random.PRNGKey(0)
    k_z, k_p = jax.random.split(key)
    z = jax.random.normal(k_z, (batch, input_dim), dtype=jnp.float32)
    params = init_generator_params(k_p, input_dim, numel)

    out = jax.block_until_ready(generator_forward(z, params, img_size))
    ref = jax.block_until_ready(generator_reference(z, params, img_size))

    assert out.shape == (batch,) + img_size, out.shape
    assert bool(jnp.all(jnp.isfinite(out)))
    assert bool(jnp.all(jnp.abs(out) <= 1.0))          # tanh output range
    max_err = float(jnp.max(jnp.abs(out - ref)))
    assert max_err < 0.1, f"max abs err vs f32 reference: {max_err}"
    print("KERNEL_OK")
</pallas_src>

<mosaic_0001>
module attributes {stable_mosaic.version = 11 : i64} {
  func.func @_hidden_stack_kernel(%arg0: memref<8x32xbf16, #tpu.memory_space<vmem>>, %arg1: memref<32x128xbf16, #tpu.memory_space<vmem>>, %arg2: memref<128x256xbf16, #tpu.memory_space<vmem>>, %arg3: memref<256x512xbf16, #tpu.memory_space<vmem>>, %arg4: memref<512x1024xbf16, #tpu.memory_space<vmem>>, %arg5: memref<1x5504xf32, #tpu.memory_space<vmem>>, %arg6: memref<8x1024xbf16, #tpu.memory_space<vmem>>) attributes {dimension_semantics = [], scalar_prefetch = 0 : i64, scratch_operands = 0 : i64, tpu.core_type = #tpu.core_type<tc>} {
    %c0 = arith.constant 0 : index
    %c0_0 = arith.constant 0 : index
    %0 = vector.load %arg0[%c0, %c0_0] : memref<8x32xbf16, #tpu.memory_space<vmem>>, vector<8x32xbf16>
    %c0_1 = arith.constant 0 : index
    %c0_2 = arith.constant 0 : index
    %1 = vector.load %arg1[%c0_1, %c0_2] : memref<32x128xbf16, #tpu.memory_space<vmem>>, vector<32x128xbf16>
    %cst = arith.constant dense<0.000000e+00> : vector<8x128xf32>
    %2 = tpu.matmul %0, %1, %cst {dimension_numbers = #tpu.dot_dimension_numbers<[1], [0], [0], [1], [0, 0, 1, 1], [], []>} : vector<8x32xbf16>, vector<32x128xbf16>, vector<8x128xf32> -> vector<8x128xf32>
    %c0_3 = arith.constant 0 : index
    %c0_4 = arith.constant 0 : index
    %3 = vector.load %arg5[%c0_3, %c0_4] : memref<1x5504xf32, #tpu.memory_space<vmem>>, vector<1x128xf32>
    %4 = vector.broadcast %3 : vector<1x128xf32> to vector<8x128xf32>
    %5 = arith.addf %2, %4 : vector<8x128xf32>
    %cst_5 = arith.constant 2.000000e-01 : f32
    %6 = vector.broadcast %cst_5 : f32 to vector<8x128xf32>
    %7 = arith.mulf %6, %5 : vector<8x128xf32>
    %8 = arith.maximumf %5, %7 : vector<8x128xf32>
    %9 = arith.truncf %8 : vector<8x128xf32> to vector<8x128xbf16>
    %c0_6 = arith.constant 0 : index
    %c0_7 = arith.constant 0 : index
    %10 = vector.load %arg2[%c0_6, %c0_7] : memref<128x256xbf16, #tpu.memory_space<vmem>>, vector<128x256xbf16>
    %cst_8 = arith.constant dense<0.000000e+00> : vector<8x256xf32>
    %11 = tpu.matmul %9, %10, %cst_8 {dimension_numbers = #tpu.dot_dimension_numbers<[1], [0], [0], [1], [0, 0, 1, 1], [], []>} : vector<8x128xbf16>, vector<128x256xbf16>, vector<8x256xf32> -> vector<8x256xf32>
    %c0_9 = arith.constant 0 : index
    %c128 = arith.constant 128 : index
    %12 = vector.load %arg5[%c0_9, %c128] : memref<1x5504xf32, #tpu.memory_space<vmem>>, vector<1x256xf32>
    %13 = vector.broadcast %12 : vector<1x256xf32> to vector<8x256xf32>
    %14 = arith.addf %11, %13 : vector<8x256xf32>
    %c0_10 = arith.constant 0 : index
    %c384 = arith.constant 384 : index
    %15 = vector.load %arg5[%c0_10, %c384] : memref<1x5504xf32, #tpu.memory_space<vmem>>, vector<1x256xf32>
    %c0_11 = arith.constant 0 : index
    %c640 = arith.constant 640 : index
    %16 = vector.load %arg5[%c0_11, %c640] : memref<1x5504xf32, #tpu.memory_space<vmem>>, vector<1x256xf32>
    %cst_12 = arith.constant dense<0.000000e+00> : vector<256xf32>
    %17 = vector.multi_reduction <add>, %14, %cst_12 [0] : vector<8x256xf32> to vector<256xf32>
    %18 = vector.shape_cast %17 : vector<256xf32> to vector<1x256xf32>
    %cst_13 = arith.constant 8.000000e+00 : f32
    %19 = vector.broadcast %cst_13 : f32 to vector<1x256xf32>
    %20 = arith.divf %18, %19 : vector<1x256xf32>
    %21 = arith.mulf %14, %14 : vector<8x256xf32>
    %cst_14 = arith.constant dense<0.000000e+00> : vector<256xf32>
    %22 = vector.multi_reduction <add>, %21, %cst_14 [0] : vector<8x256xf32> to vector<256xf32>
    %23 = vector.shape_cast %22 : vector<256xf32> to vector<1x256xf32>
    %cst_15 = arith.constant 8.000000e+00 : f32
    %24 = vector.broadcast %cst_15 : f32 to vector<1x256xf32>
    %25 = arith.divf %23, %24 : vector<1x256xf32>
    %26 = arith.mulf %20, %20 : vector<1x256xf32>
    %27 = arith.subf %25, %26 : vector<1x256xf32>
    %cst_16 = arith.constant 0.000000e+00 : f32
    %28 = vector.broadcast %cst_16 : f32 to vector<1x256xf32>
    %29 = arith.maximumf %27, %28 : vector<1x256xf32>
    %cst_17 = arith.constant 9.99999974E-6 : f32
    %30 = vector.broadcast %cst_17 : f32 to vector<1x256xf32>
    %31 = arith.addf %29, %30 : vector<1x256xf32>
    %32 = math.rsqrt %31 : vector<1x256xf32>
    %33 = arith.mulf %15, %32 : vector<1x256xf32>
    %34 = arith.mulf %20, %33 : vector<1x256xf32>
    %35 = arith.subf %16, %34 : vector<1x256xf32>
    %36 = vector.broadcast %33 : vector<1x256xf32> to vector<8x256xf32>
    %37 = arith.mulf %14, %36 : vector<8x256xf32>
    %38 = vector.broadcast %35 : vector<1x256xf32> to vector<8x256xf32>
    %39 = arith.addf %37, %38 : vector<8x256xf32>
    %cst_18 = arith.constant 2.000000e-01 : f32
    %40 = vector.broadcast %cst_18 : f32 to vector<8x256xf32>
    %41 = arith.mulf %40, %39 : vector<8x256xf32>
    %42 = arith.maximumf %39, %41 : vector<8x256xf32>
    %43 = arith.truncf %42 : vector<8x256xf32> to vector<8x256xbf16>
    %c0_19 = arith.constant 0 : index
    %c0_20 = arith.constant 0 : index
    %44 = vector.load %arg3[%c0_19, %c0_20] : memref<256x512xbf16, #tpu.memory_space<vmem>>, vector<256x512xbf16>
    %cst_21 = arith.constant dense<0.000000e+00> : vector<8x512xf32>
    %45 = tpu.matmul %43, %44, %cst_21 {dimension_numbers = #tpu.dot_dimension_numbers<[1], [0], [0], [1], [0, 0, 1, 1], [], []>} : vector<8x256xbf16>, vector<256x512xbf16>, vector<8x512xf32> -> vector<8x512xf32>
    %c0_22 = arith.constant 0 : index
    %c896 = arith.constant 896 : index
    %46 = vector.load %arg5[%c0_22, %c896] : memref<1x5504xf32, #tpu.memory_space<vmem>>, vector<1x512xf32>
    %47 = vector.broadcast %46 : vector<1x512xf32> to vector<8x512xf32>
    %48 = arith.addf %45, %47 : vector<8x512xf32>
    %c0_23 = arith.constant 0 : index
    %c1408 = arith.constant 1408 : index
    %49 = vector.load %arg5[%c0_23, %c1408] : memref<1x5504xf32, #tpu.memory_space<vmem>>, vector<1x512xf32>
    %c0_24 = arith.constant 0 : index
    %c1920 = arith.constant 1920 : index
    %50 = vector.load %arg5[%c0_24, %c1920] : memref<1x5504xf32, #tpu.memory_space<vmem>>, vector<1x512xf32>
    %cst_25 = arith.constant dense<0.000000e+00> : vector<512xf32>
    %51 = vector.multi_reduction <add>, %48, %cst_25 [0] : vector<8x512xf32> to vector<512xf32>
    %52 = vector.shape_cast %51 : vector<512xf32> to vector<1x512xf32>
    %cst_26 = arith.constant 8.000000e+00 : f32
    %53 = vector.broadcast %cst_26 : f32 to vector<1x512xf32>
    %54 = arith.divf %52, %53 : vector<1x512xf32>
    %55 = arith.mulf %48, %48 : vector<8x512xf32>
    %cst_27 = arith.constant dense<0.000000e+00> : vector<512xf32>
    %56 = vector.multi_reduction <add>, %55, %cst_27 [0] : vector<8x512xf32> to vector<512xf32>
    %57 = vector.shape_cast %56 : vector<512xf32> to vector<1x512xf32>
    %cst_28 = arith.constant 8.000000e+00 : f32
    %58 = vector.broadcast %cst_28 : f32 to vector<1x512xf32>
    %59 = arith.divf %57, %58 : vector<1x512xf32>
    %60 = arith.mulf %54, %54 : vector<1x512xf32>
    %61 = arith.subf %59, %60 : vector<1x512xf32>
    %cst_29 = arith.constant 0.000000e+00 : f32
    %62 = vector.broadcast %cst_29 : f32 to vector<1x512xf32>
    %63 = arith.maximumf %61, %62 : vector<1x512xf32>
    %cst_30 = arith.constant 9.99999974E-6 : f32
    %64 = vector.broadcast %cst_30 : f32 to vector<1x512xf32>
    %65 = arith.addf %63, %64 : vector<1x512xf32>
    %66 = math.rsqrt %65 : vector<1x512xf32>
    %67 = arith.mulf %49, %66 : vector<1x512xf32>
    %68 = arith.mulf %54, %67 : vector<1x512xf32>
    %69 = arith.subf %50, %68 : vector<1x512xf32>
    %70 = vector.broadcast %67 : vector<1x512xf32> to vector<8x512xf32>
    %71 = arith.mulf %48, %70 : vector<8x512xf32>
    %72 = vector.broadcast %69 : vector<1x512xf32> to vector<8x512xf32>
    %73 = arith.addf %71, %72 : vector<8x512xf32>
    %cst_31 = arith.constant 2.000000e-01 : f32
    %74 = vector.broadcast %cst_31 : f32 to vector<8x512xf32>
    %75 = arith.mulf %74, %73 : vector<8x512xf32>
    %76 = arith.maximumf %73, %75 : vector<8x512xf32>
    %77 = arith.truncf %76 : vector<8x512xf32> to vector<8x512xbf16>
    %c0_32 = arith.constant 0 : index
    %c0_33 = arith.constant 0 : index
    %78 = vector.load %arg4[%c0_32, %c0_33] : memref<512x1024xbf16, #tpu.memory_space<vmem>>, vector<512x1024xbf16>
    %cst_34 = arith.constant dense<0.000000e+00> : vector<8x1024xf32>
    %79 = tpu.matmul %77, %78, %cst_34 {dimension_numbers = #tpu.dot_dimension_numbers<[1], [0], [0], [1], [0, 0, 1, 1], [], []>} : vector<8x512xbf16>, vector<512x1024xbf16>, vector<8x1024xf32> -> vector<8x1024xf32>
    %c0_35 = arith.constant 0 : index
    %c2432 = arith.constant 2432 : index
    %80 = vector.load %arg5[%c0_35, %c2432] : memref<1x5504xf32, #tpu.memory_space<vmem>>, vector<1x1024xf32>
    %81 = vector.broadcast %80 : vector<1x1024xf32> to vector<8x1024xf32>
    %82 = arith.addf %79, %81 : vector<8x1024xf32>
    %c0_36 = arith.constant 0 : index
    %c3456 = arith.constant 3456 : index
    %83 = vector.load %arg5[%c0_36, %c3456] : memref<1x5504xf32, #tpu.memory_space<vmem>>, vector<1x1024xf32>
    %c0_37 = arith.constant 0 : index
    %c4480 = arith.constant 4480 : index
    %84 = vector.load %arg5[%c0_37, %c4480] : memref<1x5504xf32, #tpu.memory_space<vmem>>, vector<1x1024xf32>
    %cst_38 = arith.constant dense<0.000000e+00> : vector<1024xf32>
    %85 = vector.multi_reduction <add>, %82, %cst_38 [0] : vector<8x1024xf32> to vector<1024xf32>
    %86 = vector.shape_cast %85 : vector<1024xf32> to vector<1x1024xf32>
    %cst_39 = arith.constant 8.000000e+00 : f32
    %87 = vector.broadcast %cst_39 : f32 to vector<1x1024xf32>
    %88 = arith.divf %86, %87 : vector<1x1024xf32>
    %89 = arith.mulf %82, %82 : vector<8x1024xf32>
    %cst_40 = arith.constant dense<0.000000e+00> : vector<1024xf32>
    %90 = vector.multi_reduction <add>, %89, %cst_40 [0] : vector<8x1024xf32> to vector<1024xf32>
    %91 = vector.shape_cast %90 : vector<1024xf32> to vector<1x1024xf32>
    %cst_41 = arith.constant 8.000000e+00 : f32
    %92 = vector.broadcast %cst_41 : f32 to vector<1x1024xf32>
    %93 = arith.divf %91, %92 : vector<1x1024xf32>
    %94 = arith.mulf %88, %88 : vector<1x1024xf32>
    %95 = arith.subf %93, %94 : vector<1x1024xf32>
    %cst_42 = arith.constant 0.000000e+00 : f32
    %96 = vector.broadcast %cst_42 : f32 to vector<1x1024xf32>
    %97 = arith.maximumf %95, %96 : vector<1x1024xf32>
    %cst_43 = arith.constant 9.99999974E-6 : f32
    %98 = vector.broadcast %cst_43 : f32 to vector<1x1024xf32>
    %99 = arith.addf %97, %98 : vector<1x1024xf32>
    %100 = math.rsqrt %99 : vector<1x1024xf32>
    %101 = arith.mulf %83, %100 : vector<1x1024xf32>
    %102 = arith.mulf %88, %101 : vector<1x1024xf32>
    %103 = arith.subf %84, %102 : vector<1x1024xf32>
    %104 = vector.broadcast %101 : vector<1x1024xf32> to vector<8x1024xf32>
    %105 = arith.mulf %82, %104 : vector<8x1024xf32>
    %106 = vector.broadcast %103 : vector<1x1024xf32> to vector<8x1024xf32>
    %107 = arith.addf %105, %106 : vector<8x1024xf32>
    %cst_44 = arith.constant 2.000000e-01 : f32
    %108 = vector.broadcast %cst_44 : f32 to vector<8x1024xf32>
    %109 = arith.mulf %108, %107 : vector<8x1024xf32>
    %110 = arith.maximumf %107, %109 : vector<8x1024xf32>
    %111 = arith.truncf %110 : vector<8x1024xf32> to vector<8x1024xbf16>
    %c0_45 = arith.constant 0 : index
    %c0_46 = arith.constant 0 : index
    %112 = vector.load %arg6[%c0_45, %c0_46] : memref<8x1024xbf16, #tpu.memory_space<vmem>>, vector<8x1024xbf16>
    tpu.vector_store %arg6[%c0_45, %c0_46], %111 {strides = array<i32>} : memref<8x1024xbf16, #tpu.memory_space<vmem>>, vector<8x1024xbf16>,
    return
  }
}

</mosaic_0001>

<llo_original>
// kernel: tpu_custom_call.1
$region0: #{tpu_custom_call.1}
  #allocation0 [shape = 'u32[]', space=smem, size = 0x4, offset = 0x4, fixed_abs, tag = 'smem constant byte address 0x4 - core index']
  #allocation1 [shape = 'u32[144,128]{1,0:T(1,128)}', space=vmem, size = 0x12000, scoped, tag = 'internal scratch']
  %s0 = inlined_call_operand.hbm [shape: bf16[8,32], index: 0, kind: input, shape index: {}]
  %s1 = inlined_call_operand.hbm [shape: bf16[32,128], index: 1, kind: input, shape index: {}]
  %s2 = inlined_call_operand.hbm [shape: bf16[128,256], index: 2, kind: input, shape index: {}]
  %s3 = inlined_call_operand.hbm [shape: bf16[256,512], index: 3, kind: input, shape index: {}]
  %s4 = inlined_call_operand.hbm [shape: bf16[512,1024], index: 4, kind: input, shape index: {}]
  %s5 = inlined_call_operand.hbm [shape: f32[1,5504], index: 5, kind: input, shape index: {}]
  %s6 = inlined_call_operand.hbm [shape: bf16[8,1024], index: 6, kind: output, shape index: {}]
  %s7 = sld [smem:[#allocation0]]
  $region58: #{tpu_custom_call.1} parent=0
    _
  %s9 = ssub.s32 1, %s7
  %s10 = scalar_select 0, %s9, %s7
  $region1: #{tpu_custom_call.1} parent=0
    #allocation2 [shape = 'u8[2048]{0}', space=vmem, size = 0x800, scoped, tag = 'input window, operand 0, single buffered']
    #allocation3 [shape = 's32[1]{0}', space=sflag, size = 0x4, scoped, tag = 'scoped memory for tpu_custom_call.1']
    #allocation4 [shape = 's32[1]{0}', space=sflag, size = 0x4, scoped, tag = 'scoped memory for tpu_custom_call.1']
    #allocation5 [shape = 'u8[8192]{0}', space=vmem, size = 0x2000, scoped, tag = 'input window, operand 1, single buffered']
    #allocation6 [shape = 's32[1]{0}', space=sflag, size = 0x4, scoped, tag = 'scoped memory for tpu_custom_call.1']
    #allocation7 [shape = 'u8[65536]{0}', space=vmem, size = 0x10000, scoped, tag = 'input window, operand 2, single buffered']
    #allocation8 [shape = 'u8[262144]{0}', space=vmem, size = 0x40000, scoped, tag = 'input window, operand 3, single buffered']
    #allocation9 [shape = 's32[1]{0}', space=sflag, size = 0x4, scoped, tag = 'scoped memory for tpu_custom_call.1']
    #allocation10 [shape = 'u8[1048576]{0}', space=vmem, size = 0x100000, scoped, tag = 'input window, operand 4, single buffered']
    #allocation11 [shape = 'u8[22016]{0}', space=vmem, size = 0x5800, scoped, tag = 'input window, operand 5, single buffered']
    #allocation12 [shape = 's32[1]{0}', space=sflag, size = 0x4, scoped, tag = 'scoped memory for tpu_custom_call.1']
    #allocation13 [shape = 'u8[16384]{0}', space=vmem, size = 0x4000, scoped, tag = 'output window, operand 0, single buffered']
    %11 = vsyncpa [#allocation3], 0
    %12 = vsyncpa [#allocation6], 0
    %13 = vsyncpa [#allocation9], 0
    %14 = vsyncpa [#allocation12], 0
    %15 = vsyncpa [#allocation4], 0
    // Predicated region
    $region2: #{tpu_custom_call.1} parent=1 // pred_check
      _
    $region3: #{tpu_custom_call.1} parent=1 // pred_check_branch
      %17 = sbr.rel (0) target = $region5
    $region4: #{tpu_custom_call.1} parent=1 // pred_region
      %s19 = ssub.s32 64, 64
      %20 = vsyncadd [#allocation3], %s19
      %s22 = sshll.u32 [#allocation2], 4
      %s23 = int_to_ptr.vmem [resolvable:$true] %s22
      %25 = dma.hbm_to_vmem [thread:$0]  %s0, 64, %s23, [#allocation3]
    $region5: #{tpu_custom_call.1} parent=1 // pred_fallthru
      _
    // Predicated region
    $region6: #{tpu_custom_call.1} parent=1 // pred_check
      _
    $region7: #{tpu_custom_call.1} parent=1 // pred_check_branch
      %27 = sbr.rel (0) target = $region9
    $region8: #{tpu_custom_call.1} parent=1 // pred_region
      %s29 = ssub.s32 256, 256
      %30 = vsyncadd [#allocation6], %s29
      %s31 = sshll.u32 [#allocation5], 4
      %s32 = int_to_ptr.vmem [resolvable:$true] %s31
      %37 = dma.hbm_to_vmem [thread:$0]  %s1, 256, %s32, [#allocation6], 64, 64, 4
    $region9: #{tpu_custom_call.1} parent=1 // pred_fallthru
      _
    // Predicated region
    $region10: #{tpu_custom_call.1} parent=1 // pred_check
      _
    $region11: #{tpu_custom_call.1} parent=1 // pred_check_branch
      %39 = sbr.rel (0) target = $region13
    $region12: #{tpu_custom_call.1} parent=1 // pred_region
      %s41 = ssub.s32 2048, 2048
      %42 = vsyncadd [#allocation6], %s41
      %s43 = sshll.u32 [#allocation7], 4
      %s44 = int_to_ptr.vmem [resolvable:$true] %s43
      %49 = dma.hbm_to_vmem [thread:$0]  %s2, 2048, %s44, [#allocation6], 128, 128, 8
    $region13: #{tpu_custom_call.1} parent=1 // pred_fallthru
      _
    // Predicated region
    $region14: #{tpu_custom_call.1} parent=1 // pred_check
      _
    $region15: #{tpu_custom_call.1} parent=1 // pred_check_branch
      %51 = sbr.rel (0) target = $region17
    $region16: #{tpu_custom_call.1} parent=1 // pred_region
      %s53 = ssub.s32 8192, 8192
      %54 = vsyncadd [#allocation9], %s53
      %s55 = sshll.u32 [#allocation8], 4
      %s56 = int_to_ptr.vmem [resolvable:$true] %s55
      %61 = dma.hbm_to_vmem [thread:$0]  %s3, 8192, %s56, [#allocation9], 256, 256, 16
    $region17: #{tpu_custom_call.1} parent=1 // pred_fallthru
      _
    // Predicated region
    $region18: #{tpu_custom_call.1} parent=1 // pred_check
      _
    $region19: #{tpu_custom_call.1} parent=1 // pred_check_branch
      %63 = sbr.rel (0) target = $region21
    $region20: #{tpu_custom_call.1} parent=1 // pred_region
      %s65 = ssub.s32 32768, 32768
      %66 = vsyncadd [#allocation9], %s65
      %s67 = sshll.u32 [#allocation10], 4
      %s68 = int_to_ptr.vmem [resolvable:$true] %s67
      %73 = dma.hbm_to_vmem [thread:$0]  %s4, 32768, %s68, [#allocation9], 512, 512, 32
    $region21: #{tpu_custom_call.1} parent=1 // pred_fallthru
      _
    // Predicated region
    $region22: #{tpu_custom_call.1} parent=1 // pred_check
      _
    $region23: #{tpu_custom_call.1} parent=1 // pred_check_branch
      %75 = sbr.rel (0) target = $region25
    $region24: #{tpu_custom_call.1} parent=1 // pred_region
      %s77 = ssub.s32 688, 688
      %78 = vsyncadd [#allocation12], %s77
      %s80 = sshll.u32 [#allocation11], 4
      %s81 = int_to_ptr.vmem [resolvable:$true] %s80
      %83 = dma.hbm_to_vmem [thread:$0]  %s5, 688, %s81, [#allocation12]
    $region25: #{tpu_custom_call.1} parent=1 // pred_fallthru
      _
    // Predicated region
    $region26: #{tpu_custom_call.1} parent=1 // pred_check
      _
    $region27: #{tpu_custom_call.1} parent=1 // pred_check_branch
      %85 = sbr.rel (0) target = $region29
    $region28: #{tpu_custom_call.1} parent=1 // pred_region
      %86 = dma.done [#allocation3], 64
    $region29: #{tpu_custom_call.1} parent=1 // pred_fallthru
      _
    // Predicated region
    $region30: #{tpu_custom_call.1} parent=1 // pred_check
      _
    $region31: #{tpu_custom_call.1} parent=1 // pred_check_branch
      %88 = sbr.rel (0) target = $region33
    $region32: #{tpu_custom_call.1} parent=1 // pred_region
      %89 = dma.done [#allocation6], 256
    $region33: #{tpu_custom_call.1} parent=1 // pred_fallthru
      _
    // Predicated region
    $region34: #{tpu_custom_call.1} parent=1 // pred_check
      _
    $region35: #{tpu_custom_call.1} parent=1 // pred_check_branch
      %91 = sbr.rel (0) target = $region37
    $region36: #{tpu_custom_call.1} parent=1 // pred_region
      %92 = dma.done [#allocation6], 2048
    $region37: #{tpu_custom_call.1} parent=1 // pred_fallthru
      _
    // Predicated region
    $region38: #{tpu_custom_call.1} parent=1 // pred_check
      _
    $region39: #{tpu_custom_call.1} parent=1 // pred_check_branch
      %94 = sbr.rel (0) target = $region41
    $region40: #{tpu_custom_call.1} parent=1 // pred_region
      %95 = dma.done [#allocation9], 8192
    $region41: #{tpu_custom_call.1} parent=1 // pred_fallthru
      _
    // Predicated region
    $region42: #{tpu_custom_call.1} parent=1 // pred_check
      _
    $region43: #{tpu_custom_call.1} parent=1 // pred_check_branch
      %97 = sbr.rel (0) target = $region45
    $region44: #{tpu_custom_call.1} parent=1 // pred_region
      %98 = dma.done [#allocation9], 32768
    $region45: #{tpu_custom_call.1} parent=1 // pred_fallthru
      _
    // Predicated region
    $region46: #{tpu_custom_call.1} parent=1 // pred_check
      _
    $region47: #{tpu_custom_call.1} parent=1 // pred_check_branch
      %100 = sbr.rel (0) target = $region49
    $region48: #{tpu_custom_call.1} parent=1 // pred_region
      %101 = dma.done [#allocation12], 688
    $region49: #{tpu_custom_call.1} parent=1 // pred_fallthru
      _
    %v103 = vld [vmem:[#allocation2] sm:$0xf]
    %v104 = vld [vmem:[#allocation5] sm:$0xf]
    %v105 = vld [vmem:[#allocation5 + $0x4] sm:$0xf]
    %v106 = vld [vmem:[#allocation5 + $0x8] sm:$0xf]
    %v107 = vld [vmem:[#allocation5 + $0xc] sm:$0xf]
    %v108 = vld [vmem:[#allocation11] sm:$0x1]
    %v110 = vlaneseq
    %v111 = vshrl.u32 %v110, 7
    %v112 = vsub.s32 0, %v111
    %v113 = vrot.slane %v108, %v112
    %v119 = vunpack.c.l.b16 %v104
    %v120 = vunpack.c.l.b16 %v105
    %v121 = vunpack.c.l.b16 %v106
    %v122 = vunpack.c.l.b16 %v107
    %v123 = vpack.c.b16 %v120, %v119
    %v124 = vpack.c.b16 %v122, %v121
    %vm127 = vcmask 261120
    %v129 = vsel %vm127, %v103, 0
    %131 = vmatprep.subr.bf16.mxu0 0
    %132 = vmatpush1.bf16.msra.mxu0 %v123
    %133 = vmatprep.subr.bf16.mxu0 0
    %134 = vmatpush1.bf16.msra.mxu0 %v124
    %135 = vmatprep.subr.bf16.mxu0 0
    %136 = vmatpush1.bf16.msra.mxu0 0
    %137 = vmatprep.subr.bf16.mxu0 0
    %138 = vmatpush1.bf16.msra.mxu0 0
    %139 = vmatprep.subr.bf16.mxu0 0
    %140 = vmatpush1.bf16.msra.mxu0 0
    %141 = vmatprep.subr.bf16.mxu0 0
    %142 = vmatpush1.bf16.msra.mxu0 0
    %143 = vmatprep.subr.bf16.mxu0 0
    %144 = vmatpush1.bf16.msra.mxu0 0
    %145 = vmatprep.subr.bf16.mxu0 0
    %146 = vmatpush1.bf16.msra.mxu0 0
    %147 = vmatprep.subr.bf16.mxu0 0
    %148 = vmatpush1.bf16.msra.mxu0 0
    %149 = vmatprep.subr.bf16.mxu0 0
    %150 = vmatpush1.bf16.msra.mxu0 0
    %151 = vmatprep.subr.bf16.mxu0 0
    %152 = vmatpush1.bf16.msra.mxu0 0
    %153 = vmatprep.subr.bf16.mxu0 0
    %154 = vmatpush1.bf16.msra.mxu0 0
    %155 = vmatprep.subr.bf16.mxu0 0
    %156 = vmatpush1.bf16.msra.mxu0 0
    %157 = vmatprep.subr.bf16.mxu0 0
    %158 = vmatpush1.bf16.msra.mxu0 0
    %159 = vmatprep.subr.bf16.mxu0 0
    %160 = vmatpush1.bf16.msra.mxu0 0
    %161 = vmatprep.subr.bf16.mxu0 0
    %162 = vmatpush1.bf16.msra.mxu0 0
    %163 = vmatprep.mubr.bf16.mxu0 0
    %164 = vmatmul.mubr.bf16.gmra.mrb[0].mxu0 %v129
    %v165 = vpop.f32.mrb[0].mxu0
    %v166 = vadd.f32 %v113, %v165
    %v167 = vpop.f32.mrb[0].mxu0
    %v168 = vpop.f32.mrb[0].mxu0
    %v169 = vpop.f32.mrb[0].mxu0
    %170 = vdwg.mxu0
    %v171 = vmul.f32 %v166, 0.2
    %v172 = vmax.f32 %v166, %v171
    %v173 = vpack.c.bf16 %v172, %v172
    %v174 = vld [vmem:[#allocation7] sm:$0xff]
    %v175 = vld [vmem:[#allocation7 + $0x8] sm:$0xff]
    %v176 = vld [vmem:[#allocation7 + $0x10] sm:$0xff]
    %v177 = vld [vmem:[#allocation7 + $0x18] sm:$0xff]
    %v178 = vld [vmem:[#allocation7 + $0x20] sm:$0xff]
    %v179 = vld [vmem:[#allocation7 + $0x28] sm:$0xff]
    %v180 = vld [vmem:[#allocation7 + $0x30] sm:$0xff]
    %v181 = vld [vmem:[#allocation7 + $0x38] sm:$0xff]
    %v182 = vld [vmem:[#allocation7 + $0x40] sm:$0xff]
    %v183 = vld [vmem:[#allocation7 + $0x48] sm:$0xff]
    %v184 = vld [vmem:[#allocation7 + $0x50] sm:$0xff]
    %v185 = vld [vmem:[#allocation7 + $0x58] sm:$0xff]
    %v186 = vld [vmem:[#allocation7 + $0x60] sm:$0xff]
    %v187 = vld [vmem:[#allocation7 + $0x68] sm:$0xff]
    %v188 = vld [vmem:[#allocation7 + $0x70] sm:$0xff]
    %v189 = vld [vmem:[#allocation7 + $0x78] sm:$0xff]
    %v190 = vld [vmem:[#allocation11 + $0x1] sm:$0x3]
    %v192 = vlaneseq
    %v193 = vshrl.u32 %v192, 7
    %v194 = vsub.s32 0, %v193
    %v195 = vrot.slane %v190, %v194
    %v196 = vlaneseq
    %v197 = vshrl.u32 %v196, 7
    %v198 = vsub.s32 1, %v197
    %v199 = vrot.slane %v190, %v198
    %v218 = vunpack.c.l.b16 %v174
    %v219 = vunpack.c.h.b16 %v174
    %v220 = vunpack.c.l.b16 %v175
    %v221 = vunpack.c.h.b16 %v175
    %v222 = vunpack.c.l.b16 %v176
    %v223 = vunpack.c.h.b16 %v176
    %v224 = vunpack.c.l.b16 %v177
    %v225 = vunpack.c.h.b16 %v177
    %v226 = vunpack.c.l.b16 %v178
    %v227 = vunpack.c.h.b16 %v178
    %v228 = vunpack.c.l.b16 %v179
    %v229 = vunpack.c.h.b16 %v179
    %v230 = vunpack.c.l.b16 %v180
    %v231 = vunpack.c.h.b16 %v180
    %v232 = vunpack.c.l.b16 %v181
    %v233 = vunpack.c.h.b16 %v181
    %v234 = vunpack.c.l.b16 %v182
    %v235 = vunpack.c.h.b16 %v182
    %v236 = vunpack.c.l.b16 %v183
    %v237 = vunpack.c.h.b16 %v183
    %v238 = vunpack.c.l.b16 %v184
    %v239 = vunpack.c.h.b16 %v184
    %v240 = vunpack.c.l.b16 %v185
    %v241 = vunpack.c.h.b16 %v185
    %v242 = vunpack.c.l.b16 %v186
    %v243 = vunpack.c.h.b16 %v186
    %v244 = vunpack.c.l.b16 %v187
    %v245 = vunpack.c.h.b16 %v187
    %v246 = vunpack.c.l.b16 %v188
    %v247 = vunpack.c.h.b16 %v188
    %v248 = vunpack.c.l.b16 %v189
    %v249 = vunpack.c.h.b16 %v189
    %v250 = vpack.c.b16 %v220, %v218
    %v251 = vpack.c.b16 %v221, %v219
    %v252 = vpack.c.b16 %v224, %v222
    %v253 = vpack.c.b16 %v225, %v223
    %v254 = vpack.c.b16 %v228, %v226
    %v255 = vpack.c.b16 %v229, %v227
    %v256 = vpack.c.b16 %v232, %v230
    %v257 = vpack.c.b16 %v233, %v231
    %v258 = vpack.c.b16 %v236, %v234
    %v259 = vpack.c.b16 %v237, %v235
    %v260 = vpack.c.b16 %v240, %v238
    %v261 = vpack.c.b16 %v241, %v239
    %v262 = vpack.c.b16 %v244, %v242
    %v263 = vpack.c.b16 %v245, %v243
    %v264 = vpack.c.b16 %v248, %v246
    %v265 = vpack.c.b16 %v249, %v247
    %282 = vmatprep.subr.bf16.mxu0 %v251
    %283 = vmatpush1.bf16.msra.mxu0 %v250
    %284 = vmatprep.subr.bf16.mxu0 %v253
    %285 = vmatpush1.bf16.msra.mxu0 %v252
    %286 = vmatprep.subr.bf16.mxu0 %v255
    %287 = vmatpush1.bf16.msra.mxu0 %v254
    %288 = vmatprep.subr.bf16.mxu0 %v257
    %289 = vmatpush1.bf16.msra.mxu0 %v256
    %290 = vmatprep.subr.bf16.mxu0 %v259
    %291 = vmatpush1.bf16.msra.mxu0 %v258
    %292 = vmatprep.subr.bf16.mxu0 %v261
    %293 = vmatpush1.bf16.msra.mxu0 %v260
    %294 = vmatprep.subr.bf16.mxu0 %v263
    %295 = vmatpush1.bf16.msra.mxu0 %v262
    %296 = vmatprep.subr.bf16.mxu0 %v265
    %297 = vmatpush1.bf16.msra.mxu0 %v264
    %298 = vmatprep.subr.bf16.mxu0 0
    %299 = vmatpush1.bf16.msra.mxu0 0
    %300 = vmatprep.subr.bf16.mxu0 0
    %301 = vmatpush1.bf16.msra.mxu0 0
    %302 = vmatprep.subr.bf16.mxu0 0
    %303 = vmatpush1.bf16.msra.mxu0 0
    %304 = vmatprep.subr.bf16.mxu0 0
    %305 = vmatpush1.bf16.msra.mxu0 0
    %306 = vmatprep.subr.bf16.mxu0 0
    %307 = vmatpush1.bf16.msra.mxu0 0
    %308 = vmatprep.subr.bf16.mxu0 0
    %309 = vmatpush1.bf16.msra.mxu0 0
    %310 = vmatprep.subr.bf16.mxu0 0
    %311 = vmatpush1.bf16.msra.mxu0 0
    %312 = vmatprep.subr.bf16.mxu0 0
    %313 = vmatpush1.bf16.msra.mxu0 0
    %314 = vmatprep.mubr.bf16.mxu0 0
    %315 = vmatmul.mubr.bf16.gmra.mrb[0].mxu0 %v173
    %v316 = vpop.f32.mrb[0].mxu0
    %v317 = vadd.f32 %v195, %v316
    %v318 = vpop.f32.mrb[0].mxu0
    %v319 = vadd.f32 %v199, %v318
    %v320 = vpop.f32.mrb[0].mxu0
    %v321 = vpop.f32.mrb[0].mxu0
    %322 = vdwg.mxu0
    %v323 = vld [vmem:[#allocation11 + $0x3] sm:$0x3]
    %v324 = vld [vmem:[#allocation11 + $0x5] sm:$0x3]
    %v325 = vrot.slane %v317, 4
    %v326 = vadd.f32 %v317, %v325
    %v327 = vrot.slane %v326, 2
    %v328 = vadd.f32 %v326, %v327
    %v329 = vrot.slane %v328, 1
    %v330 = vadd.f32 %v328, %v329
    %v331 = vrot.slane %v319, 4
    %v332 = vadd.f32 %v319, %v331
    %v333 = vrot.slane %v332, 2
    %v334 = vadd.f32 %v332, %v333
    %v335 = vrot.slane %v334, 1
    %v336 = vadd.f32 %v334, %v335
    %v337 = vrcp.pop 8.0
    %v338 = vmul.f32 %v330, %v337
    %v339 = vmul.f32 %v336, %v337
    %v340 = vmul.f32 %v317, %v317
    %v341 = vmul.f32 %v319, %v319
    %v342 = vrot.slane %v340, 4
    %v343 = vadd.f32 %v340, %v342
    %v344 = vrot.slane %v343, 2
    %v345 = vadd.f32 %v343, %v344
    %v346 = vrot.slane %v345, 1
    %v347 = vadd.f32 %v345, %v346
    %v348 = vrot.slane %v341, 4
    %v349 = vadd.f32 %v341, %v348
    %v350 = vrot.slane %v349, 2
    %v351 = vadd.f32 %v349, %v350
    %v352 = vrot.slane %v351, 1
    %v353 = vadd.f32 %v351, %v352
    %v354 = vmul.f32 %v347, %v337
    %v355 = vmul.f32 %v353, %v337
    %v356 = vmul.f32 %v338, %v338
    %v357 = vmul.f32 %v339, %v339
    %v358 = vsub.f32 %v354, %v356
    %v359 = vsub.f32 %v355, %v357
    %v360 = vmax.f32 %v358, 0.0
    %v361 = vmax.f32 %v359, 0.0
    %v362 = vadd.f32 %v360, 1e-05
    %v363 = vadd.f32 %v361, 1e-05
    %v364 = vrsqrt.pop %v362
    %v365 = vrsqrt.pop %v363
    %v368 = vcombine.low %v364, %v365
    %v370 = vunpack.c.l.s4 1966171168
    %v371 = vunpack.c.0.s8 %v370
    %v372 = vlaneseq
    %v373 = vshrl.u32 %v372, 7
    %v374 = vsub.s32 %v371, %v373
    %v375 = vrot.slane %v368, %v374
    %v377 = vunpack.c.l.s4 1966171168
    %v378 = vunpack.c.0.s8 %v377
    %v379 = vlaneseq
    %v380 = vshrl.u32 %v379, 7
    %v381 = vsub.s32 %v378, %v380
    %v382 = vrot.slane %v375, %v381
    %v384 = vmul.f32 %v323, %v382
    %v386 = vlaneseq
    %v387 = vshrl.u32 %v386, 7
    %v388 = vsub.s32 0, %v387
    %v389 = vrot.slane %v384, %v388
    %v390 = vlaneseq
    %v391 = vshrl.u32 %v390, 7
    %v392 = vsub.s32 1, %v391
    %v393 = vrot.slane %v384, %v392
    %v396 = vmul.f32 %v338, %v389
    %v397 = vmul.f32 %v339, %v393
    %v400 = vcombine.low %v396, %v397
    %v402 = vunpack.c.l.s4 1966171168
    %v403 = vunpack.c.0.s8 %v402
    %v404 = vlaneseq
    %v405 = vshrl.u32 %v404, 7
    %v406 = vsub.s32 %v403, %v405
    %v407 = vrot.slane %v400, %v406
    %v409 = vunpack.c.l.s4 1966171168
    %v410 = vunpack.c.0.s8 %v409
    %v411 = vlaneseq
    %v412 = vshrl.u32 %v411, 7
    %v413 = vsub.s32 %v410, %v412
    %v414 = vrot.slane %v407, %v413
    %v416 = vsub.f32 %v324, %v414
    %v417 = vmul.f32 %v317, %v389
    %v418 = vmul.f32 %v319, %v393
    %v420 = vlaneseq
    %v421 = vshrl.u32 %v420, 7
    %v422 = vsub.s32 0, %v421
    %v423 = vrot.slane %v416, %v422
    %v424 = vlaneseq
    %v425 = vshrl.u32 %v424, 7
    %v426 = vsub.s32 1, %v425
    %v427 = vrot.slane %v416, %v426
    %v430 = vadd.f32 %v417, %v423
    %v431 = vadd.f32 %v418, %v427
    %v432 = vmul.f32 %v430, 0.2
    %v433 = vmul.f32 %v431, 0.2
    %v434 = vmax.f32 %v430, %v432
    %v435 = vmax.f32 %v431, %v433
    %v436 = vpack.c.bf16 %v434, %v434
    %v437 = vpack.c.bf16 %v435, %v435
    %v438 = vld [vmem:[#allocation8] sm:$0xff]
    %v439 = vld [vmem:[#allocation8 + $0x8] sm:$0xff]
    %v440 = vld [vmem:[#allocation8 + $0x10] sm:$0xff]
    %v441 = vld [vmem:[#allocation8 + $0x18] sm:$0xff]
    %v442 = vld [vmem:[#allocation8 + $0x20] sm:$0xff]
    %v443 = vld [vmem:[#allocation8 + $0x28] sm:$0xff]
    %v444 = vld [vmem:[#allocation8 + $0x30] sm:$0xff]
    %v445 = vld [vmem:[#allocation8 + $0x38] sm:$0xff]
    %v446 = vld [vmem:[#allocation8 + $0x40] sm:$0xff]
    %v447 = vld [vmem:[#allocation8 + $0x48] sm:$0xff]
    %v448 = vld [vmem:[#allocation8 + $0x50] sm:$0xff]
    %v449 = vld [vmem:[#allocation8 + $0x58] sm:$0xff]
    %v450 = vld [vmem:[#allocation8 + $0x60] sm:$0xff]
    %v451 = vld [vmem:[#allocation8 + $0x68] sm:$0xff]
    %v452 = vld [vmem:[#allocation8 + $0x70] sm:$0xff]
    %v453 = vld [vmem:[#allocation8 + $0x78] sm:$0xff]
    %v454 = vld [vmem:[#allocation8 + $0x80] sm:$0xff]
    %v455 = vld [vmem:[#allocation8 + $0x88] sm:$0xff]
    %v456 = vld [vmem:[#allocation8 + $0x90] sm:$0xff]
    %v457 = vld [vmem:[#allocation8 + $0x98] sm:$0xff]
    %v458 = vld [vmem:[#allocation8 + $0xa0] sm:$0xff]
    %v459 = vld [vmem:[#allocation8 + $0xa8] sm:$0xff]
    %v460 = vld [vmem:[#allocation8 + $0xb0] sm:$0xff]
    %v461 = vld [vmem:[#allocation8 + $0xb8] sm:$0xff]
    %v462 = vld [vmem:[#allocation8 + $0xc0] sm:$0xff]
    %v463 = vld [vmem:[#allocation8 + $0xc8] sm:$0xff]
    %v464 = vld [vmem:[#allocation8 + $0xd0] sm:$0xff]
    %v465 = vld [vmem:[#allocation8 + $0xd8] sm:$0xff]
    %v466 = vld [vmem:[#allocation8 + $0xe0] sm:$0xff]
    %v467 = vld [vmem:[#allocation8 + $0xe8] sm:$0xff]
    %v468 = vld [vmem:[#allocation8 + $0xf0] sm:$0xff]
    %v469 = vld [vmem:[#allocation8 + $0xf8] sm:$0xff]
    %v470 = vld [vmem:[#allocation8 + $0x100] sm:$0xff]
    %v471 = vld [vmem:[#allocation8 + $0x108] sm:$0xff]
    %v472 = vld [vmem:[#allocation8 + $0x110] sm:$0xff]
    %v473 = vld [vmem:[#allocation8 + $0x118] sm:$0xff]
    %v474 = vld [vmem:[#allocation8 + $0x120] sm:$0xff]
    %v475 = vld [vmem:[#allocation8 + $0x128] sm:$0xff]
    %v476 = vld [vmem:[#allocation8 + $0x130] sm:$0xff]
    %v477 = vld [vmem:[#allocation8 + $0x138] sm:$0xff]
    %v478 = vld [vmem:[#allocation8 + $0x140] sm:$0xff]
    %v479 = vld [vmem:[#allocation8 + $0x148] sm:$0xff]
    %v480 = vld [vmem:[#allocation8 + $0x150] sm:$0xff]
    %v481 = vld [vmem:[#allocation8 + $0x158] sm:$0xff]
    %v482 = vld [vmem:[#allocation8 + $0x160] sm:$0xff]
    %v483 = vld [vmem:[#allocation8 + $0x168] sm:$0xff]
    %v484 = vld [vmem:[#allocation8 + $0x170] sm:$0xff]
    %v485 = vld [vmem:[#allocation8 + $0x178] sm:$0xff]
    %v486 = vld [vmem:[#allocation8 + $0x180] sm:$0xff]
    %v487 = vld [vmem:[#allocation8 + $0x188] sm:$0xff]
    %v488 = vld [vmem:[#allocation8 + $0x190] sm:$0xff]
    %v489 = vld [vmem:[#allocation8 + $0x198] sm:$0xff]
    %v490 = vld [vmem:[#allocation8 + $0x1a0] sm:$0xff]
    %v491 = vld [vmem:[#allocation8 + $0x1a8] sm:$0xff]
    %v492 = vld [vmem:[#allocation8 + $0x1b0] sm:$0xff]
    %v493 = vld [vmem:[#allocation8 + $0x1b8] sm:$0xff]
    %v494 = vld [vmem:[#allocation8 + $0x1c0] sm:$0xff]
    %v495 = vld [vmem:[#allocation8 + $0x1c8] sm:$0xff]
    %v496 = vld [vmem:[#allocation8 + $0x1d0] sm:$0xff]
    %v497 = vld [vmem:[#allocation8 + $0x1d8] sm:$0xff]
    %v498 = vld [vmem:[#allocation8 + $0x1e0] sm:$0xff]
    %v499 = vld [vmem:[#allocation8 + $0x1e8] sm:$0xff]
    %v500 = vld [vmem:[#allocation8 + $0x1f0] sm:$0xff]
    %v501 = vld [vmem:[#allocation8 + $0x1f8] sm:$0xff]
    %v502 = vld [vmem:[#allocation11 + $0x7] sm:$0xf]
    %v504 = vlaneseq
    %v505 = vshrl.u32 %v504, 7
    %v506 = vsub.s32 0, %v505
    %v507 = vrot.slane %v502, %v506
    %v508 = vlaneseq
    %v509 = vshrl.u32 %v508, 7
    %v510 = vsub.s32 1, %v509
    %v511 = vrot.slane %v502, %v510
    %v512 = vlaneseq
    %v513 = vshrl.u32 %v512, 7
    %v514 = vsub.s32 2, %v513
    %v515 = vrot.slane %v502, %v514
    %v516 = vlaneseq
    %v517 = vshrl.u32 %v516, 7
    %v518 = vsub.s32 3, %v517
    %v519 = vrot.slane %v502, %v518
    %v588 = vunpack.c.l.b16 %v438
    %v589 = vunpack.c.h.b16 %v438
    %v590 = vunpack.c.l.b16 %v439
    %v591 = vunpack.c.h.b16 %v439
    %v592 = vunpack.c.l.b16 %v440
    %v593 = vunpack.c.h.b16 %v440
    %v594 = vunpack.c.l.b16 %v441
    %v595 = vunpack.c.h.b16 %v441
    %v596 = vunpack.c.l.b16 %v442
    %v597 = vunpack.c.h.b16 %v442
    %v598 = vunpack.c.l.b16 %v443
    %v599 = vunpack.c.h.b16 %v443
    %v600 = vunpack.c.l.b16 %v444
    %v601 = vunpack.c.h.b16 %v444
    %v602 = vunpack.c.l.b16 %v445
    %v603 = vunpack.c.h.b16 %v445
    %v604 = vunpack.c.l.b16 %v446
    %v605 = vunpack.c.h.b16 %v446
    %v606 = vunpack.c.l.b16 %v447
    %v607 = vunpack.c.h.b16 %v447
    %v608 = vunpack.c.l.b16 %v448
    %v609 = vunpack.c.h.b16 %v448
    %v610 = vunpack.c.l.b16 %v449
    %v611 = vunpack.c.h.b16 %v449
    %v612 = vunpack.c.l.b16 %v450
    %v613 = vunpack.c.h.b16 %v450
    %v614 = vunpack.c.l.b16 %v451
    %v615 = vunpack.c.h.b16 %v451
    %v616 = vunpack.c.l.b16 %v452
    %v617 = vunpack.c.h.b16 %v452
    %v618 = vunpack.c.l.b16 %v453
    %v619 = vunpack.c.h.b16 %v453
    %v620 = vunpack.c.l.b16 %v454
    %v621 = vunpack.c.h.b16 %v454
    %v622 = vunpack.c.l.b16 %v455
    %v623 = vunpack.c.h.b16 %v455
    %v624 = vunpack.c.l.b16 %v456
    %v625 = vunpack.c.h.b16 %v456
    %v626 = vunpack.c.l.b16 %v457
    %v627 = vunpack.c.h.b16 %v457
    %v628 = vunpack.c.l.b16 %v458
    %v629 = vunpack.c.h.b16 %v458
    %v630 = vunpack.c.l.b16 %v459
    %v631 = vunpack.c.h.b16 %v459
    %v632 = vunpack.c.l.b16 %v460
    %v633 = vunpack.c.h.b16 %v460
    %v634 = vunpack.c.l.b16 %v461
    %v635 = vunpack.c.h.b16 %v461
    %v636 = vunpack.c.l.b16 %v462
    %v637 = vunpack.c.h.b16 %v462
    %v638 = vunpack.c.l.b16 %v463
    %v639 = vunpack.c.h.b16 %v463
    %v640 = vunpack.c.l.b16 %v464
    %v641 = vunpack.c.h.b16 %v464
    %v642 = vunpack.c.l.b16 %v465
    %v643 = vunpack.c.h.b16 %v465
    %v644 = vunpack.c.l.b16 %v466
    %v645 = vunpack.c.h.b16 %v466
    %v646 = vunpack.c.l.b16 %v467
    %v647 = vunpack.c.h.b16 %v467
    %v648 = vunpack.c.l.b16 %v468
    %v649 = vunpack.c.h.b16 %v468
    %v650 = vunpack.c.l.b16 %v469
    %v651 = vunpack.c.h.b16 %v469
    %v652 = vunpack.c.l.b16 %v470
    %v653 = vunpack.c.h.b16 %v470
    %v654 = vunpack.c.l.b16 %v471
    %v655 = vunpack.c.h.b16 %v471
    %v656 = vunpack.c.l.b16 %v472
    %v657 = vunpack.c.h.b16 %v472
    %v658 = vunpack.c.l.b16 %v473
    %v659 = vunpack.c.h.b16 %v473
    %v660 = vunpack.c.l.b16 %v474
    %v661 = vunpack.c.h.b16 %v474
    %v662 = vunpack.c.l.b16 %v475
    %v663 = vunpack.c.h.b16 %v475
    %v664 = vunpack.c.l.b16 %v476
    %v665 = vunpack.c.h.b16 %v476
    %v666 = vunpack.c.l.b16 %v477
    %v667 = vunpack.c.h.b16 %v477
    %v668 = vunpack.c.l.b16 %v478
    %v669 = vunpack.c.h.b16 %v478
    %v670 = vunpack.c.l.b16 %v479
    %v671 = vunpack.c.h.b16 %v479
    %v672 = vunpack.c.l.b16 %v480
    %v673 = vunpack.c.h.b16 %v480
    %v674 = vunpack.c.l.b16 %v481
    %v675 = vunpack.c.h.b16 %v481
    %v676 = vunpack.c.l.b16 %v482
    %v677 = vunpack.c.h.b16 %v482
    %v678 = vunpack.c.l.b16 %v483
    %v679 = vunpack.c.h.b16 %v483
    %v680 = vunpack.c.l.b16 %v484
    %v681 = vunpack.c.h.b16 %v484
    %v682 = vunpack.c.l.b16 %v485
    %v683 = vunpack.c.h.b16 %v485
    %v684 = vunpack.c.l.b16 %v486
    %v685 = vunpack.c.h.b16 %v486
    %v686 = vunpack.c.l.b16 %v487
    %v687 = vunpack.c.h.b16 %v487
    %v688 = vunpack.c.l.b16 %v488
    %v689 = vunpack.c.h.b16 %v488
    %v690 = vunpack.c.l.b16 %v489
    %v691 = vunpack.c.h.b16 %v489
    %v692 = vunpack.c.l.b16 %v490
    %v693 = vunpack.c.h.b16 %v490
    %v694 = vunpack.c.l.b16 %v491
    %v695 = vunpack.c.h.b16 %v491
    %v696 = vunpack.c.l.b16 %v492
    %v697 = vunpack.c.h.b16 %v492
    %v698 = vunpack.c.l.b16 %v493
    %v699 = vunpack.c.h.b16 %v493
    %v700 = vunpack.c.l.b16 %v494
    %v701 = vunpack.c.h.b16 %v494
    %v702 = vunpack.c.l.b16 %v495
    %v703 = vunpack.c.h.b16 %v495
    %v704 = vunpack.c.l.b16 %v496
    %v705 = vunpack.c.h.b16 %v496
    %v706 = vunpack.c.l.b16 %v497
    %v707 = vunpack.c.h.b16 %v497
    %v708 = vunpack.c.l.b16 %v498
    %v709 = vunpack.c.h.b16 %v498
    %v710 = vunpack.c.l.b16 %v499
    %v711 = vunpack.c.h.b16 %v499
    %v712 = vunpack.c.l.b16 %v500
    %v713 = vunpack.c.h.b16 %v500
    %v714 = vunpack.c.l.b16 %v501
    %v715 = vunpack.c.h.b16 %v501
    %v716 = vpack.c.b16 %v592, %v588
    %v717 = vpack.c.b16 %v593, %v589
    %v718 = vpack.c.b16 %v594, %v590
    %v719 = vpack.c.b16 %v595, %v591
    %v720 = vpack.c.b16 %v600, %v596
    %v721 = vpack.c.b16 %v601, %v597
    %v722 = vpack.c.b16 %v602, %v598
    %v723 = vpack.c.b16 %v603, %v599
    %v724 = vpack.c.b16 %v608, %v604
    %v725 = vpack.c.b16 %v609, %v605
    %v726 = vpack.c.b16 %v610, %v606
    %v727 = vpack.c.b16 %v611, %v607
    %v728 = vpack.c.b16 %v616, %v612
    %v729 = vpack.c.b16 %v617, %v613
    %v730 = vpack.c.b16 %v618, %v614
    %v731 = vpack.c.b16 %v619, %v615
    %v732 = vpack.c.b16 %v624, %v620
    %v733 = vpack.c.b16 %v625, %v621
    %v734 = vpack.c.b16 %v626, %v622
    %v735 = vpack.c.b16 %v627, %v623
    %v736 = vpack.c.b16 %v632, %v628
    %v737 = vpack.c.b16 %v633, %v629
    %v738 = vpack.c.b16 %v634, %v630
    %v739 = vpack.c.b16 %v635, %v631
    %v740 = vpack.c.b16 %v640, %v636
    %v741 = vpack.c.b16 %v641, %v637
    %v742 = vpack.c.b16 %v642, %v638
    %v743 = vpack.c.b16 %v643, %v639
    %v744 = vpack.c.b16 %v648, %v644
    %v745 = vpack.c.b16 %v649, %v645
    %v746 = vpack.c.b16 %v650, %v646
    %v747 = vpack.c.b16 %v651, %v647
    %v748 = vpack.c.b16 %v656, %v652
    %v749 = vpack.c.b16 %v657, %v653
    %v750 = vpack.c.b16 %v658, %v654
    %v751 = vpack.c.b16 %v659, %v655
    %v752 = vpack.c.b16 %v664, %v660
    %v753 = vpack.c.b16 %v665, %v661
    %v754 = vpack.c.b16 %v666, %v662
    %v755 = vpack.c.b16 %v667, %v663
    %v756 = vpack.c.b16 %v672, %v668
    %v757 = vpack.c.b16 %v673, %v669
    %v758 = vpack.c.b16 %v674, %v670
    %v759 = vpack.c.b16 %v675, %v671
    %v760 = vpack.c.b16 %v680, %v676
    %v761 = vpack.c.b16 %v681, %v677
    %v762 = vpack.c.b16 %v682, %v678
    %v763 = vpack.c.b16 %v683, %v679
    %v764 = vpack.c.b16 %v688, %v684
    %v765 = vpack.c.b16 %v689, %v685
    %v766 = vpack.c.b16 %v690, %v686
    %v767 = vpack.c.b16 %v691, %v687
    %v768 = vpack.c.b16 %v696, %v692
    %v769 = vpack.c.b16 %v697, %v693
    %v770 = vpack.c.b16 %v698, %v694
    %v771 = vpack.c.b16 %v699, %v695
    %v772 = vpack.c.b16 %v704, %v700
    %v773 = vpack.c.b16 %v705, %v701
    %v774 = vpack.c.b16 %v706, %v702
    %v775 = vpack.c.b16 %v707, %v703
    %v776 = vpack.c.b16 %v712, %v708
    %v777 = vpack.c.b16 %v713, %v709
    %v778 = vpack.c.b16 %v714, %v710
    %v779 = vpack.c.b16 %v715, %v711
    %844 = vmatprep.subr.bf16.mxu0 %v717
    %845 = vmatpush1.bf16.msra.mxu0 %v716
    %846 = vmatprep.subr.bf16.mxu0 %v721
    %847 = vmatpush1.bf16.msra.mxu0 %v720
    %848 = vmatprep.subr.bf16.mxu0 %v725
    %849 = vmatpush1.bf16.msra.mxu0 %v724
    %850 = vmatprep.subr.bf16.mxu0 %v729
    %851 = vmatpush1.bf16.msra.mxu0 %v728
    %852 = vmatprep.subr.bf16.mxu0 %v733
    %853 = vmatpush1.bf16.msra.mxu0 %v732
    %854 = vmatprep.subr.bf16.mxu0 %v737
    %855 = vmatpush1.bf16.msra.mxu0 %v736
    %856 = vmatprep.subr.bf16.mxu0 %v741
    %857 = vmatpush1.bf16.msra.mxu0 %v740
    %858 = vmatprep.subr.bf16.mxu0 %v745
    %859 = vmatpush1.bf16.msra.mxu0 %v744
    %860 = vmatprep.subr.bf16.mxu0 %v749
    %861 = vmatpush1.bf16.msra.mxu0 %v748
    %862 = vmatprep.subr.bf16.mxu0 %v753
    %863 = vmatpush1.bf16.msra.mxu0 %v752
    %864 = vmatprep.subr.bf16.mxu0 %v757
    %865 = vmatpush1.bf16.msra.mxu0 %v756
    %866 = vmatprep.subr.bf16.mxu0 %v761
    %867 = vmatpush1.bf16.msra.mxu0 %v760
    %868 = vmatprep.subr.bf16.mxu0 %v765
    %869 = vmatpush1.bf16.msra.mxu0 %v764
    %870 = vmatprep.subr.bf16.mxu0 %v769
    %871 = vmatpush1.bf16.msra.mxu0 %v768
    %872 = vmatprep.subr.bf16.mxu0 %v773
    %873 = vmatpush1.bf16.msra.mxu0 %v772
    %874 = vmatprep.subr.bf16.mxu0 %v777
    %875 = vmatpush1.bf16.msra.mxu0 %v776
    %876 = vmatprep.mubr.bf16.mxu0 %v437
    %877 = vmatmul.mubr.bf16.gmra.mrb[0].mxu0 %v436
    %v878 = vpop.f32.mrb[0].mxu0
    %v879 = vadd.f32 %v507, %v878
    %v880 = vpop.f32.mrb[0].mxu0
    %v881 = vadd.f32 %v511, %v880
    %v882 = vpop.f32.mrb[0].mxu0
    %v883 = vpop.f32.mrb[0].mxu0
    %884 = vdwg.mxu0
    %885 = vmatprep.subr.bf16.mxu0 %v719
    %886 = vmatpush1.bf16.msra.mxu0 %v718
    %887 = vmatprep.subr.bf16.mxu0 %v723
    %888 = vmatpush1.bf16.msra.mxu0 %v722
    %889 = vmatprep.subr.bf16.mxu0 %v727
    %890 = vmatpush1.bf16.msra.mxu0 %v726
    %891 = vmatprep.subr.bf16.mxu0 %v731
    %892 = vmatpush1.bf16.msra.mxu0 %v730
    %893 = vmatprep.subr.bf16.mxu0 %v735
    %894 = vmatpush1.bf16.msra.mxu0 %v734
    %895 = vmatprep.subr.bf16.mxu0 %v739
    %896 = vmatpush1.bf16.msra.mxu0 %v738
    %897 = vmatprep.subr.bf16.mxu0 %v743
    %898 = vmatpush1.bf16.msra.mxu0 %v742
    %899 = vmatprep.subr.bf16.mxu0 %v747
    %900 = vmatpush1.bf16.msra.mxu0 %v746
    %901 = vmatprep.subr.bf16.mxu0 %v751
    %902 = vmatpush1.bf16.msra.mxu0 %v750
    %903 = vmatprep.subr.bf16.mxu0 %v755
    %904 = vmatpush1.bf16.msra.mxu0 %v754
    %905 = vmatprep.subr.bf16.mxu0 %v759
    %906 = vmatpush1.bf16.msra.mxu0 %v758
    %907 = vmatprep.subr.bf16.mxu0 %v763
    %908 = vmatpush1.bf16.msra.mxu0 %v762
    %909 = vmatprep.subr.bf16.mxu0 %v767
    %910 = vmatpush1.bf16.msra.mxu0 %v766
    %911 = vmatprep.subr.bf16.mxu0 %v771
    %912 = vmatpush1.bf16.msra.mxu0 %v770
    %913 = vmatprep.subr.bf16.mxu0 %v775
    %914 = vmatpush1.bf16.msra.mxu0 %v774
    %915 = vmatprep.subr.bf16.mxu0 %v779
    %916 = vmatpush1.bf16.msra.mxu0 %v778
    %917 = vmatprep.mubr.bf16.mxu0 %v437
    %918 = vmatmul.mubr.bf16.gmra.mrb[0].mxu0 %v436
    %v919 = vpop.f32.mrb[0].mxu0
    %v920 = vadd.f32 %v515, %v919
    %v921 = vpop.f32.mrb[0].mxu0
    %v922 = vadd.f32 %v519, %v921
    %v923 = vpop.f32.mrb[0].mxu0
    %v924 = vpop.f32.mrb[0].mxu0
    %925 = vdwg.mxu0
    %v926 = vld [vmem:[#allocation11 + $0xb] sm:$0xf]
    %v927 = vld [vmem:[#allocation11 + $0xf] sm:$0xf]
    %v928 = vrot.slane %v879, 4
    %v929 = vadd.f32 %v879, %v928
    %v930 = vrot.slane %v929, 2
    %v931 = vadd.f32 %v929, %v930
    %v932 = vrot.slane %v931, 1
    %v933 = vadd.f32 %v931, %v932
    %v934 = vrot.slane %v881, 4
    %v935 = vadd.f32 %v881, %v934
    %v936 = vrot.slane %v935, 2
    %v937 = vadd.f32 %v935, %v936
    %v938 = vrot.slane %v937, 1
    %v939 = vadd.f32 %v937, %v938
    %v940 = vrot.slane %v920, 4
    %v941 = vadd.f32 %v920, %v940
    %v942 = vrot.slane %v941, 2
    %v943 = vadd.f32 %v941, %v942
    %v944 = vrot.slane %v943, 1
    %v945 = vadd.f32 %v943, %v944
    %v946 = vrot.slane %v922, 4
    %v947 = vadd.f32 %v922, %v946
    %v948 = vrot.slane %v947, 2
    %v949 = vadd.f32 %v947, %v948
    %v950 = vrot.slane %v949, 1
    %v951 = vadd.f32 %v949, %v950
    %v952 = vmul.f32 %v933, %v337
    %v953 = vmul.f32 %v939, %v337
    %v954 = vmul.f32 %v945, %v337
    %v955 = vmul.f32 %v951, %v337
    %v956 = vmul.f32 %v879, %v879
    %v957 = vmul.f32 %v881, %v881
    %v958 = vmul.f32 %v920, %v920
    %v959 = vmul.f32 %v922, %v922
    %v960 = vrot.slane %v956, 4
    %v961 = vadd.f32 %v956, %v960
    %v962 = vrot.slane %v961, 2
    %v963 = vadd.f32 %v961, %v962
    %v964 = vrot.slane %v963, 1
    %v965 = vadd.f32 %v963, %v964
    %v966 = vrot.slane %v957, 4
    %v967 = vadd.f32 %v957, %v966
    %v968 = vrot.slane %v967, 2
    %v969 = vadd.f32 %v967, %v968
    %v970 = vrot.slane %v969, 1
    %v971 = vadd.f32 %v969, %v970
    %v972 = vrot.slane %v958, 4
    %v973 = vadd.f32 %v958, %v972
    %v974 = vrot.slane %v973, 2
    %v975 = vadd.f32 %v973, %v974
    %v976 = vrot.slane %v975, 1
    %v977 = vadd.f32 %v975, %v976
    %v978 = vrot.slane %v959, 4
    %v979 = vadd.f32 %v959, %v978
    %v980 = vrot.slane %v979, 2
    %v981 = vadd.f32 %v979, %v980
    %v982 = vrot.slane %v981, 1
    %v983 = vadd.f32 %v981, %v982
    %v984 = vmul.f32 %v965, %v337
    %v985 = vmul.f32 %v971, %v337
    %v986 = vmul.f32 %v977, %v337
    %v987 = vmul.f32 %v983, %v337
    %v988 = vmul.f32 %v952, %v952
    %v989 = vmul.f32 %v953, %v953
    %v990 = vmul.f32 %v954, %v954
    %v991 = vmul.f32 %v955, %v955
    %v992 = vsub.f32 %v984, %v988
    %v993 = vsub.f32 %v985, %v989
    %v994 = vsub.f32 %v986, %v990
    %v995 = vsub.f32 %v987, %v991
    %v996 = vmax.f32 %v992, 0.0
    %v997 = vmax.f32 %v993, 0.0
    %v998 = vmax.f32 %v994, 0.0
    %v999 = vmax.f32 %v995, 0.0
    %v1000 = vadd.f32 %v996, 1e-05
    %v1001 = vadd.f32 %v997, 1e-05
    %v1002 = vadd.f32 %v998, 1e-05
    %v1003 = vadd.f32 %v999, 1e-05
    %v1004 = vrsqrt.pop %v1000
    %v1005 = vrsqrt.pop %v1001
    %v1006 = vrsqrt.pop %v1002
    %v1007 = vrsqrt.pop %v1003
    %v1012 = vcombine.low %v1004, %v1005
    %v1013 = vcombine.low %v1006, %v1007
    %v1015 = vunpack.c.l.s4 1966171168
    %v1016 = vunpack.c.0.s8 %v1015
    %v1017 = vlaneseq
    %v1018 = vshrl.u32 %v1017, 7
    %v1019 = vsub.s32 %v1016, %v1018
    %v1020 = vrot.slane %v1012, %v1019
    %v1022 = vunpack.c.l.s4 1966171168
    %v1023 = vunpack.c.0.s8 %v1022
    %v1024 = vlaneseq
    %v1025 = vshrl.u32 %v1024, 7
    %v1026 = vsub.s32 %v1023, %v1025
    %v1027 = vrot.slane %v1013, %v1026
    %v1028 = vcombine.low %v1020, %v1027
    %v1030 = vunpack.c.l.s4 1966171168
    %v1031 = vunpack.c.0.s8 %v1030
    %v1032 = vlaneseq
    %v1033 = vshrl.u32 %v1032, 7
    %v1034 = vsub.s32 %v1031, %v1033
    %v1035 = vrot.slane %v1028, %v1034
    %v1037 = vmul.f32 %v926, %v1035
    %v1039 = vlaneseq
    %v1040 = vshrl.u32 %v1039, 7
    %v1041 = vsub.s32 0, %v1040
    %v1042 = vrot.slane %v1037, %v1041
    %v1043 = vlaneseq
    %v1044 = vshrl.u32 %v1043, 7
    %v1045 = vsub.s32 1, %v1044
    %v1046 = vrot.slane %v1037, %v1045
    %v1047 = vlaneseq
    %v1048 = vshrl.u32 %v1047, 7
    %v1049 = vsub.s32 2, %v1048
    %v1050 = vrot.slane %v1037, %v1049
    %v1051 = vlaneseq
    %v1052 = vshrl.u32 %v1051, 7
    %v1053 = vsub.s32 3, %v1052
    %v1054 = vrot.slane %v1037, %v1053
    %v1059 = vmul.f32 %v952, %v1042
    %v1060 = vmul.f32 %v953, %v1046
    %v1061 = vmul.f32 %v954, %v1050
    %v1062 = vmul.f32 %v955, %v1054
    %v1067 = vcombine.low %v1059, %v1060
    %v1068 = vcombine.low %v1061, %v1062
    %v1070 = vunpack.c.l.s4 1966171168
    %v1071 = vunpack.c.0.s8 %v1070
    %v1072 = vlaneseq
    %v1073 = vshrl.u32 %v1072, 7
    %v1074 = vsub.s32 %v1071, %v1073
    %v1075 = vrot.slane %v1067, %v1074
    %v1077 = vunpack.c.l.s4 1966171168
    %v1078 = vunpack.c.0.s8 %v1077
    %v1079 = vlaneseq
    %v1080 = vshrl.u32 %v1079, 7
    %v1081 = vsub.s32 %v1078, %v1080
    %v1082 = vrot.slane %v1068, %v1081
    %v1083 = vcombine.low %v1075, %v1082
    %v1085 = vunpack.c.l.s4 1966171168
    %v1086 = vunpack.c.0.s8 %v1085
    %v1087 = vlaneseq
    %v1088 = vshrl.u32 %v1087, 7
    %v1089 = vsub.s32 %v1086, %v1088
    %v1090 = vrot.slane %v1083, %v1089
    %v1092 = vsub.f32 %v927, %v1090
    %v1093 = vmul.f32 %v879, %v1042
    %v1094 = vmul.f32 %v881, %v1046
    %v1095 = vmul.f32 %v920, %v1050
    %v1096 = vmul.f32 %v922, %v1054
    %v1098 = vlaneseq
    %v1099 = vshrl.u32 %v1098, 7
    %v1100 = vsub.s32 0, %v1099
    %v1101 = vrot.slane %v1092, %v1100
    %v1102 = vlaneseq
    %v1103 = vshrl.u32 %v1102, 7
    %v1104 = vsub.s32 1, %v1103
    %v1105 = vrot.slane %v1092, %v1104
    %v1106 = vlaneseq
    %v1107 = vshrl.u32 %v1106, 7
    %v1108 = vsub.s32 2, %v1107
    %v1109 = vrot.slane %v1092, %v1108
    %v1110 = vlaneseq
    %v1111 = vshrl.u32 %v1110, 7
    %v1112 = vsub.s32 3, %v1111
    %v1113 = vrot.slane %v1092, %v1112
    %v1118 = vadd.f32 %v1093, %v1101
    %v1119 = vadd.f32 %v1094, %v1105
    %v1120 = vadd.f32 %v1095, %v1109
    %v1121 = vadd.f32 %v1096, %v1113
    %v1122 = vmul.f32 %v1118, 0.2
    %v1123 = vmul.f32 %v1119, 0.2
    %v1124 = vmul.f32 %v1120, 0.2
    %v1125 = vmul.f32 %v1121, 0.2
    %v1126 = vmax.f32 %v1118, %v1122
    %v1127 = vmax.f32 %v1119, %v1123
    %v1128 = vmax.f32 %v1120, %v1124
    %v1129 = vmax.f32 %v1121, %v1125
    %v1130 = vpack.c.bf16 %v1126, %v1126
    %v1131 = vpack.c.bf16 %v1127, %v1127
    %v1132 = vpack.c.bf16 %v1128, %v1128
    %v1133 = vpack.c.bf16 %v1129, %v1129
    %v1134 = vld [vmem:[#allocation10] sm:$0xff]
    %v1135 = vld [vmem:[#allocation10 + $0x8] sm:$0xff]
    %v1136 = vld [vmem:[#allocation10 + $0x10] sm:$0xff]
    %v1137 = vld [vmem:[#allocation10 + $0x18] sm:$0xff]
    %v1138 = vld [vmem:[#allocation10 + $0x20] sm:$0xff]
    %v1139 = vld [vmem:[#allocation10 + $0x28] sm:$0xff]
    %v1140 = vld [vmem:[#allocation10 + $0x30] sm:$0xff]
    %v1141 = vld [vmem:[#allocation10 + $0x38] sm:$0xff]
    %v1142 = vld [vmem:[#allocation10 + $0x40] sm:$0xff]
    %v1143 = vld [vmem:[#allocation10 + $0x48] sm:$0xff]
    %v1144 = vld [vmem:[#allocation10 + $0x50] sm:$0xff]
    %v1145 = vld [vmem:[#allocation10 + $0x58] sm:$0xff]
    %v1146 = vld [vmem:[#allocation10 + $0x60] sm:$0xff]
    %v1147 = vld [vmem:[#allocation10 + $0x68] sm:$0xff]
    %v1148 = vld [vmem:[#allocation10 + $0x70] sm:$0xff]
    %v1149 = vld [vmem:[#allocation10 + $0x78] sm:$0xff]
    %v1150 = vld [vmem:[#allocation10 + $0x80] sm:$0xff]
    %v1151 = vld [vmem:[#allocation10 + $0x88] sm:$0xff]
    %v1152 = vld [vmem:[#allocation10 + $0x90] sm:$0xff]
    %v1153 = vld [vmem:[#allocation10 + $0x98] sm:$0xff]
    %v1154 = vld [vmem:[#allocation10 + $0xa0] sm:$0xff]
    %v1155 = vld [vmem:[#allocation10 + $0xa8] sm:$0xff]
    %v1156 = vld [vmem:[#allocation10 + $0xb0] sm:$0xff]
    %v1157 = vld [vmem:[#allocation10 + $0xb8] sm:$0xff]
    %v1158 = vld [vmem:[#allocation10 + $0xc0] sm:$0xff]
    %v1159 = vld [vmem:[#allocation10 + $0xc8] sm:$0xff]
    %v1160 = vld [vmem:[#allocation10 + $0xd0] sm:$0xff]
    %v1161 = vld [vmem:[#allocation10 + $0xd8] sm:$0xff]
    %v1162 = vld [vmem:[#allocation10 + $0xe0] sm:$0xff]
    %v1163 = vld [vmem:[#allocation10 + $0xe8] sm:$0xff]
    %v1164 = vld [vmem:[#allocation10 + $0xf0] sm:$0xff]
    %v1165 = vld [vmem:[#allocation10 + $0xf8] sm:$0xff]
    %v1166 = vld [vmem:[#allocation10 + $0x100] sm:$0xff]
    %v1167 = vld [vmem:[#allocation10 + $0x108] sm:$0xff]
    %v1168 = vld [vmem:[#allocation10 + $0x110] sm:$0xff]
    %v1169 = vld [vmem:[#allocation10 + $0x118] sm:$0xff]
    %v1170 = vld [vmem:[#allocation10 + $0x120] sm:$0xff]
    %v1171 = vld [vmem:[#allocation10 + $0x128] sm:$0xff]
    %v1172 = vld [vmem:[#allocation10 + $0x130] sm:$0xff]
    %v1173 = vld [vmem:[#allocation10 + $0x138] sm:$0xff]
    %v1174 = vld [vmem:[#allocation10 + $0x140] sm:$0xff]
    %v1175 = vld [vmem:[#allocation10 + $0x148] sm:$0xff]
    %v1176 = vld [vmem:[#allocation10 + $0x150] sm:$0xff]
    %v1177 = vld [vmem:[#allocation10 + $0x158] sm:$0xff]
    %v1178 = vld [vmem:[#allocation10 + $0x160] sm:$0xff]
    %v1179 = vld [vmem:[#allocation10 + $0x168] sm:$0xff]
    %v1180 = vld [vmem:[#allocation10 + $0x170] sm:$0xff]
    %v1181 = vld [vmem:[#allocation10 + $0x178] sm:$0xff]
    %v1182 = vld [vmem:[#allocation10 + $0x180] sm:$0xff]
    %v1183 = vld [vmem:[#allocation10 + $0x188] sm:$0xff]
    %v1184 = vld [vmem:[#allocation10 + $0x190] sm:$0xff]
    %v1185 = vld [vmem:[#allocation10 + $0x198] sm:$0xff]
    %v1186 = vld [vmem:[#allocation10 + $0x1a0] sm:$0xff]
    %v1187 = vld [vmem:[#allocation10 + $0x1a8] sm:$0xff]
    %v1188 = vld [vmem:[#allocation10 + $0x1b0] sm:$0xff]
    %v1189 = vld [vmem:[#allocation10 + $0x1b8] sm:$0xff]
    %v1190 = vld [vmem:[#allocation10 + $0x1c0] sm:$0xff]
    %v1191 = vld [vmem:[#allocation10 + $0x1c8] sm:$0xff]
    %v1192 = vld [vmem:[#allocation10 + $0x1d0] sm:$0xff]
    %v1193 = vld [vmem:[#allocation10 + $0x1d8] sm:$0xff]
    %v1194 = vld [vmem:[#allocation10 + $0x1e0] sm:$0xff]
    %v1195 = vld [vmem:[#allocation10 + $0x1e8] sm:$0xff]
    %v1196 = vld [vmem:[#allocation10 + $0x1f0] sm:$0xff]
    %v1197 = vld [vmem:[#allocation10 + $0x1f8] sm:$0xff]
    %v1198 = vld [vmem:[#allocation10 + $0x200] sm:$0xff]
    %v1199 = vld [vmem:[#allocation10 + $0x208] sm:$0xff]
    %v1200 = vld [vmem:[#allocation10 + $0x210] sm:$0xff]
    %v1201 = vld [vmem:[#allocation10 + $0x218] sm:$0xff]
    %v1202 = vld [vmem:[#allocation10 + $0x220] sm:$0xff]
    %v1203 = vld [vmem:[#allocation10 + $0x228] sm:$0xff]
    %v1204 = vld [vmem:[#allocation10 + $0x230] sm:$0xff]
    %v1205 = vld [vmem:[#allocation10 + $0x238] sm:$0xff]
    %v1206 = vld [vmem:[#allocation10 + $0x240] sm:$0xff]
    %v1207 = vld [vmem:[#allocation10 + $0x248] sm:$0xff]
    %v1208 = vld [vmem:[#allocation10 + $0x250] sm:$0xff]
    %v1209 = vld [vmem:[#allocation10 + $0x258] sm:$0xff]
    %v1210 = vld [vmem:[#allocation10 + $0x260] sm:$0xff]
    %v1211 = vld [vmem:[#allocation10 + $0x268] sm:$0xff]
    %v1212 = vld [vmem:[#allocation10 + $0x270] sm:$0xff]
    %v1213 = vld [vmem:[#allocation10 + $0x278] sm:$0xff]
    %v1214 = vld [vmem:[#allocation10 + $0x280] sm:$0xff]
    %v1215 = vld [vmem:[#allocation10 + $0x288] sm:$0xff]
    %v1216 = vld [vmem:[#allocation10 + $0x290] sm:$0xff]
    %v1217 = vld [vmem:[#allocation10 + $0x298] sm:$0xff]
    %v1218 = vld [vmem:[#allocation10 + $0x2a0] sm:$0xff]
    %v1219 = vld [vmem:[#allocation10 + $0x2a8] sm:$0xff]
    %v1220 = vld [vmem:[#allocation10 + $0x2b0] sm:$0xff]
    %v1221 = vld [vmem:[#allocation10 + $0x2b8] sm:$0xff]
    %v1222 = vld [vmem:[#allocation10 + $0x2c0] sm:$0xff]
    %v1223 = vld [vmem:[#allocation10 + $0x2c8] sm:$0xff]
    %v1224 = vld [vmem:[#allocation10 + $0x2d0] sm:$0xff]
    %v1225 = vld [vmem:[#allocation10 + $0x2d8] sm:$0xff]
    %v1226 = vld [vmem:[#allocation10 + $0x2e0] sm:$0xff]
    %v1227 = vld [vmem:[#allocation10 + $0x2e8] sm:$0xff]
    %v1228 = vld [vmem:[#allocation10 + $0x2f0] sm:$0xff]
    %v1229 = vld [vmem:[#allocation10 + $0x2f8] sm:$0xff]
    %v1230 = vld [vmem:[#allocation10 + $0x300] sm:$0xff]
    %v1231 = vld [vmem:[#allocation10 + $0x308] sm:$0xff]
    %v1232 = vld [vmem:[#allocation10 + $0x310] sm:$0xff]
    %v1233 = vld [vmem:[#allocation10 + $0x318] sm:$0xff]
    %v1234 = vld [vmem:[#allocation10 + $0x320] sm:$0xff]
    %v1235 = vld [vmem:[#allocation10 + $0x328] sm:$0xff]
    %v1236 = vld [vmem:[#allocation10 + $0x330] sm:$0xff]
    %v1237 = vld [vmem:[#allocation10 + $0x338] sm:$0xff]
    %v1238 = vld [vmem:[#allocation10 + $0x340] sm:$0xff]
    %v1239 = vld [vmem:[#allocation10 + $0x348] sm:$0xff]
    %v1240 = vld [vmem:[#allocation10 + $0x350] sm:$0xff]
    %v1241 = vld [vmem:[#allocation10 + $0x358] sm:$0xff]
    %v1242 = vld [vmem:[#allocation10 + $0x360] sm:$0xff]
    %v1243 = vld [vmem:[#allocation10 + $0x368] sm:$0xff]
    %v1244 = vld [vmem:[#allocation10 + $0x370] sm:$0xff]
    %v1245 = vld [vmem:[#allocation10 + $0x378] sm:$0xff]
    %v1246 = vld [vmem:[#allocation10 + $0x380] sm:$0xff]
    %v1247 = vld [vmem:[#allocation10 + $0x388] sm:$0xff]
    %v1248 = vld [vmem:[#allocation10 + $0x390] sm:$0xff]
    %v1249 = vld [vmem:[#allocation10 + $0x398] sm:$0xff]
    %v1250 = vld [vmem:[#allocation10 + $0x3a0] sm:$0xff]
    %v1251 = vld [vmem:[#allocation10 + $0x3a8] sm:$0xff]
    %v1252 = vld [vmem:[#allocation10 + $0x3b0] sm:$0xff]
    %v1253 = vld [vmem:[#allocation10 + $0x3b8] sm:$0xff]
    %v1254 = vld [vmem:[#allocation10 + $0x3c0] sm:$0xff]
    %v1255 = vld [vmem:[#allocation10 + $0x3c8] sm:$0xff]
    %v1256 = vld [vmem:[#allocation10 + $0x3d0] sm:$0xff]
    %v1257 = vld [vmem:[#allocation10 + $0x3d8] sm:$0xff]
    %v1258 = vld [vmem:[#allocation10 + $0x3e0] sm:$0xff]
    %v1259 = vld [vmem:[#allocation10 + $0x3e8] sm:$0xff]
    %v1260 = vld [vmem:[#allocation10 + $0x3f0] sm:$0xff]
    %v1261 = vld [vmem:[#allocation10 + $0x3f8] sm:$0xff]
    %v1262 = vld [vmem:[#allocation10 + $0x400] sm:$0xff]
    %v1263 = vld [vmem:[#allocation10 + $0x408] sm:$0xff]
    %v1264 = vld [vmem:[#allocation10 + $0x410] sm:$0xff]
    %v1265 = vld [vmem:[#allocation10 + $0x418] sm:$0xff]
    %v1266 = vld [vmem:[#allocation10 + $0x420] sm:$0xff]
    %v1267 = vld [vmem:[#allocation10 + $0x428] sm:$0xff]
    %v1268 = vld [vmem:[#allocation10 + $0x430] sm:$0xff]
    %v1269 = vld [vmem:[#allocation10 + $0x438] sm:$0xff]
    %v1270 = vld [vmem:[#allocation10 + $0x440] sm:$0xff]
    %v1271 = vld [vmem:[#allocation10 + $0x448] sm:$0xff]
    %v1272 = vld [vmem:[#allocation10 + $0x450] sm:$0xff]
    %v1273 = vld [vmem:[#allocation10 + $0x458] sm:$0xff]
    %v1274 = vld [vmem:[#allocation10 + $0x460] sm:$0xff]
    %v1275 = vld [vmem:[#allocation10 + $0x468] sm:$0xff]
    %v1276 = vld [vmem:[#allocation10 + $0x470] sm:$0xff]
    %v1277 = vld [vmem:[#allocation10 + $0x478] sm:$0xff]
    %v1278 = vld [vmem:[#allocation10 + $0x480] sm:$0xff]
    %v1279 = vld [vmem:[#allocation10 + $0x488] sm:$0xff]
    %v1280 = vld [vmem:[#allocation10 + $0x490] sm:$0xff]
    %v1281 = vld [vmem:[#allocation10 + $0x498] sm:$0xff]
    %v1282 = vld [vmem:[#allocation10 + $0x4a0] sm:$0xff]
    %v1283 = vld [vmem:[#allocation10 + $0x4a8] sm:$0xff]
    %v1284 = vld [vmem:[#allocation10 + $0x4b0] sm:$0xff]
    %v1285 = vld [vmem:[#allocation10 + $0x4b8] sm:$0xff]
    %v1286 = vld [vmem:[#allocation10 + $0x4c0] sm:$0xff]
    %v1287 = vld [vmem:[#allocation10 + $0x4c8] sm:$0xff]
    %v1288 = vld [vmem:[#allocation10 + $0x4d0] sm:$0xff]
    %v1289 = vld [vmem:[#allocation10 + $0x4d8] sm:$0xff]
    %v1290 = vld [vmem:[#allocation10 + $0x4e0] sm:$0xff]
    %v1291 = vld [vmem:[#allocation10 + $0x4e8] sm:$0xff]
    %v1292 = vld [vmem:[#allocation10 + $0x4f0] sm:$0xff]
    %v1293 = vld [vmem:[#allocation10 + $0x4f8] sm:$0xff]
    %v1294 = vld [vmem:[#allocation10 + $0x500] sm:$0xff]
    %v1295 = vld [vmem:[#allocation10 + $0x508] sm:$0xff]
    %v1296 = vld [vmem:[#allocation10 + $0x510] sm:$0xff]
    %v1297 = vld [vmem:[#allocation10 + $0x518] sm:$0xff]
    %v1298 = vld [vmem:[#allocation10 + $0x520] sm:$0xff]
    %v1299 = vld [vmem:[#allocation10 + $0x528] sm:$0xff]
    %v1300 = vld [vmem:[#allocation10 + $0x530] sm:$0xff]
    %v1301 = vld [vmem:[#allocation10 + $0x538] sm:$0xff]
    %v1302 = vld [vmem:[#allocation10 + $0x540] sm:$0xff]
    %v1303 = vld [vmem:[#allocation10 + $0x548] sm:$0xff]
    %v1304 = vld [vmem:[#allocation10 + $0x550] sm:$0xff]
    %v1305 = vld [vmem:[#allocation10 + $0x558] sm:$0xff]
    %v1306 = vld [vmem:[#allocation10 + $0x560] sm:$0xff]
    %v1307 = vld [vmem:[#allocation10 + $0x568] sm:$0xff]
    %v1308 = vld [vmem:[#allocation10 + $0x570] sm:$0xff]
    %v1309 = vld [vmem:[#allocation10 + $0x578] sm:$0xff]
    %v1310 = vld [vmem:[#allocation10 + $0x580] sm:$0xff]
    %v1311 = vld [vmem:[#allocation10 + $0x588] sm:$0xff]
    %v1312 = vld [vmem:[#allocation10 + $0x590] sm:$0xff]
    %v1313 = vld [vmem:[#allocation10 + $0x598] sm:$0xff]
    %v1314 = vld [vmem:[#allocation10 + $0x5a0] sm:$0xff]
    %v1315 = vld [vmem:[#allocation10 + $0x5a8] sm:$0xff]
    %v1316 = vld [vmem:[#allocation10 + $0x5b0] sm:$0xff]
    %v1317 = vld [vmem:[#allocation10 + $0x5b8] sm:$0xff]
    %v1318 = vld [vmem:[#allocation10 + $0x5c0] sm:$0xff]
    %v1319 = vld [vmem:[#allocation10 + $0x5c8] sm:$0xff]
    %v1320 = vld [vmem:[#allocation10 + $0x5d0] sm:$0xff]
    %v1321 = vld [vmem:[#allocation10 + $0x5d8] sm:$0xff]
    %v1322 = vld [vmem:[#allocation10 + $0x5e0] sm:$0xff]
    %v1323 = vld [vmem:[#allocation10 + $0x5e8] sm:$0xff]
    %v1324 = vld [vmem:[#allocation10 + $0x5f0] sm:$0xff]
    %v1325 = vld [vmem:[#allocation10 + $0x5f8] sm:$0xff]
    %v1326 = vld [vmem:[#allocation10 + $0x600] sm:$0xff]
    %v1327 = vld [vmem:[#allocation10 + $0x608] sm:$0xff]
    %v1328 = vld [vmem:[#allocation10 + $0x610] sm:$0xff]
    %v1329 = vld [vmem:[#allocation10 + $0x618] sm:$0xff]
    %v1330 = vld [vmem:[#allocation10 + $0x620] sm:$0xff]
    %v1331 = vld [vmem:[#allocation10 + $0x628] sm:$0xff]
    %v1332 = vld [vmem:[#allocation10 + $0x630] sm:$0xff]
    %v1333 = vld [vmem:[#allocation10 + $0x638] sm:$0xff]
    %v1334 = vld [vmem:[#allocation10 + $0x640] sm:$0xff]
    %v1335 = vld [vmem:[#allocation10 + $0x648] sm:$0xff]
    %v1336 = vld [vmem:[#allocation10 + $0x650] sm:$0xff]
    %v1337 = vld [vmem:[#allocation10 + $0x658] sm:$0xff]
    %v1338 = vld [vmem:[#allocation10 + $0x660] sm:$0xff]
    %v1339 = vld [vmem:[#allocation10 + $0x668] sm:$0xff]
    %v1340 = vld [vmem:[#allocation10 + $0x670] sm:$0xff]
    %v1341 = vld [vmem:[#allocation10 + $0x678] sm:$0xff]
    %v1342 = vld [vmem:[#allocation10 + $0x680] sm:$0xff]
    %v1343 = vld [vmem:[#allocation10 + $0x688] sm:$0xff]
    %v1344 = vld [vmem:[#allocation10 + $0x690] sm:$0xff]
    %v1345 = vld [vmem:[#allocation10 + $0x698] sm:$0xff]
    %v1346 = vld [vmem:[#allocation10 + $0x6a0] sm:$0xff]
    %v1347 = vld [vmem:[#allocation10 + $0x6a8] sm:$0xff]
    %v1348 = vld [vmem:[#allocation10 + $0x6b0] sm:$0xff]
    %v1349 = vld [vmem:[#allocation10 + $0x6b8] sm:$0xff]
    %v1350 = vld [vmem:[#allocation10 + $0x6c0] sm:$0xff]
    %v1351 = vld [vmem:[#allocation10 + $0x6c8] sm:$0xff]
    %v1352 = vld [vmem:[#allocation10 + $0x6d0] sm:$0xff]
    %v1353 = vld [vmem:[#allocation10 + $0x6d8] sm:$0xff]
    %v1354 = vld [vmem:[#allocation10 + $0x6e0] sm:$0xff]
    %v1355 = vld [vmem:[#allocation10 + $0x6e8] sm:$0xff]
    %v1356 = vld [vmem:[#allocation10 + $0x6f0] sm:$0xff]
    %v1357 = vld [vmem:[#allocation10 + $0x6f8] sm:$0xff]
    %v1358 = vld [vmem:[#allocation10 + $0x700] sm:$0xff]
    %v1359 = vld [vmem:[#allocation10 + $0x708] sm:$0xff]
    %v1360 = vld [vmem:[#allocation10 + $0x710] sm:$0xff]
    %v1361 = vld [vmem:[#allocation10 + $0x718] sm:$0xff]
    %v1362 = vld [vmem:[#allocation10 + $0x720] sm:$0xff]
    %v1363 = vld [vmem:[#allocation10 + $0x728] sm:$0xff]
    %v1364 = vld [vmem:[#allocation10 + $0x730] sm:$0xff]
    %v1365 = vld [vmem:[#allocation10 + $0x738] sm:$0xff]
    %v1366 = vld [vmem:[#allocation10 + $0x740] sm:$0xff]
    %v1367 = vld [vmem:[#allocation10 + $0x748] sm:$0xff]
    %v1368 = vld [vmem:[#allocation10 + $0x750] sm:$0xff]
    %v1369 = vld [vmem:[#allocation10 + $0x758] sm:$0xff]
    %v1370 = vld [vmem:[#allocation10 + $0x760] sm:$0xff]
    %v1371 = vld [vmem:[#allocation10 + $0x768] sm:$0xff]
    %v1372 = vld [vmem:[#allocation10 + $0x770] sm:$0xff]
    %v1373 = vld [vmem:[#allocation10 + $0x778] sm:$0xff]
    %v1374 = vld [vmem:[#allocation10 + $0x780] sm:$0xff]
    %v1375 = vld [vmem:[#allocation10 + $0x788] sm:$0xff]
    %v1376 = vld [vmem:[#allocation10 + $0x790] sm:$0xff]
    %v1377 = vld [vmem:[#allocation10 + $0x798] sm:$0xff]
    %v1378 = vld [vmem:[#allocation10 + $0x7a0] sm:$0xff]
    %v1379 = vld [vmem:[#allocation10 + $0x7a8] sm:$0xff]
    %v1380 = vld [vmem:[#allocation10 + $0x7b0] sm:$0xff]
    %v1381 = vld [vmem:[#allocation10 + $0x7b8] sm:$0xff]
    %v1382 = vld [vmem:[#allocation10 + $0x7c0] sm:$0xff]
    %v1383 = vld [vmem:[#allocation10 + $0x7c8] sm:$0xff]
    %v1384 = vld [vmem:[#allocation10 + $0x7d0] sm:$0xff]
    %v1385 = vld [vmem:[#allocation10 + $0x7d8] sm:$0xff]
    %v1386 = vld [vmem:[#allocation10 + $0x7e0] sm:$0xff]
    %v1387 = vld [vmem:[#allocation10 + $0x7e8] sm:$0xff]
    %v1388 = vld [vmem:[#allocation10 + $0x7f0] sm:$0xff]
    %v1389 = vld [vmem:[#allocation10 + $0x7f8] sm:$0xff]
    %v1390 = vld [vmem:[#allocation11 + $0x13] sm:$0xff]
    %v1392 = vlaneseq
    %v1393 = vshrl.u32 %v1392, 7
    %v1394 = vsub.s32 0, %v1393
    %v1395 = vrot.slane %v1390, %v1394
    %v1396 = vlaneseq
    %v1397 = vshrl.u32 %v1396, 7
    %v1398 = vsub.s32 1, %v1397
    %v1399 = vrot.slane %v1390, %v1398
    %v1400 = vlaneseq
    %v1401 = vshrl.u32 %v1400, 7
    %v1402 = vsub.s32 2, %v1401
    %v1403 = vrot.slane %v1390, %v1402
    %v1404 = vlaneseq
    %v1405 = vshrl.u32 %v1404, 7
    %v1406 = vsub.s32 3, %v1405
    %v1407 = vrot.slane %v1390, %v1406
    %v1408 = vlaneseq
    %v1409 = vshrl.u32 %v1408, 7
    %v1410 = vsub.s32 4, %v1409
    %v1411 = vrot.slane %v1390, %v1410
    %v1412 = vlaneseq
    %v1413 = vshrl.u32 %v1412, 7
    %v1414 = vsub.s32 5, %v1413
    %v1415 = vrot.slane %v1390, %v1414
    %v1416 = vlaneseq
    %v1417 = vshrl.u32 %v1416, 7
    %v1418 = vsub.s32 6, %v1417
    %v1419 = vrot.slane %v1390, %v1418
    %v1420 = vlaneseq
    %v1421 = vshrl.u32 %v1420, 7
    %v1422 = vsub.s32 7, %v1421
    %v1423 = vrot.slane %v1390, %v1422
    %v1688 = vunpack.c.l.b16 %v1134
    %v1689 = vunpack.c.h.b16 %v1134
    %v1690 = vunpack.c.l.b16 %v1135
    %v1691 = vunpack.c.h.b16 %v1135
    %v1692 = vunpack.c.l.b16 %v1136
    %v1693 = vunpack.c.h.b16 %v1136
    %v1694 = vunpack.c.l.b16 %v1137
    %v1695 = vunpack.c.h.b16 %v1137
    %v1696 = vunpack.c.l.b16 %v1138
    %v1697 = vunpack.c.h.b16 %v1138
    %v1698 = vunpack.c.l.b16 %v1139
    %v1699 = vunpack.c.h.b16 %v1139
    %v1700 = vunpack.c.l.b16 %v1140
    %v1701 = vunpack.c.h.b16 %v1140
    %v1702 = vunpack.c.l.b16 %v1141
    %v1703 = vunpack.c.h.b16 %v1141
    %v1704 = vunpack.c.l.b16 %v1142
    %v1705 = vunpack.c.h.b16 %v1142
    %v1706 = vunpack.c.l.b16 %v1143
    %v1707 = vunpack.c.h.b16 %v1143
    %v1708 = vunpack.c.l.b16 %v1144
    %v1709 = vunpack.c.h.b16 %v1144
    %v1710 = vunpack.c.l.b16 %v1145
    %v1711 = vunpack.c.h.b16 %v1145
    %v1712 = vunpack.c.l.b16 %v1146
    %v1713 = vunpack.c.h.b16 %v1146
    %v1714 = vunpack.c.l.b16 %v1147
    %v1715 = vunpack.c.h.b16 %v1147
    %v1716 = vunpack.c.l.b16 %v1148
    %v1717 = vunpack.c.h.b16 %v1148
    %v1718 = vunpack.c.l.b16 %v1149
    %v1719 = vunpack.c.h.b16 %v1149
    %v1720 = vunpack.c.l.b16 %v1150
    %v1721 = vunpack.c.h.b16 %v1150
    %v1722 = vunpack.c.l.b16 %v1151
    %v1723 = vunpack.c.h.b16 %v1151
    %v1724 = vunpack.c.l.b16 %v1152
    %v1725 = vunpack.c.h.b16 %v1152
    %v1726 = vunpack.c.l.b16 %v1153
    %v1727 = vunpack.c.h.b16 %v1153
    %v1728 = vunpack.c.l.b16 %v1154
    %v1729 = vunpack.c.h.b16 %v1154
    %v1730 = vunpack.c.l.b16 %v1155
    %v1731 = vunpack.c.h.b16 %v1155
    %v1732 = vunpack.c.l.b16 %v1156
    %v1733 = vunpack.c.h.b16 %v1156
    %v1734 = vunpack.c.l.b16 %v1157
    %v1735 = vunpack.c.h.b16 %v1157
    %v1736 = vunpack.c.l.b16 %v1158
    %v1737 = vunpack.c.h.b16 %v1158
    %v1738 = vunpack.c.l.b16 %v1159
    %v1739 = vunpack.c.h.b16 %v1159
    %v1740 = vunpack.c.l.b16 %v1160
    %v1741 = vunpack.c.h.b16 %v1160
    %v1742 = vunpack.c.l.b16 %v1161
    %v1743 = vunpack.c.h.b16 %v1161
    %v1744 = vunpack.c.l.b16 %v1162
    %v1745 = vunpack.c.h.b16 %v1162
    %v1746 = vunpack.c.l.b16 %v1163
    %v1747 = vunpack.c.h.b16 %v1163
    %v1748 = vunpack.c.l.b16 %v1164
    %v1749 = vunpack.c.h.b16 %v1164
    %v1750 = vunpack.c.l.b16 %v1165
    %v1751 = vunpack.c.h.b16 %v1165
    %v1752 = vunpack.c.l.b16 %v1166
    %v1753 = vunpack.c.h.b16 %v1166
    %v1754 = vunpack.c.l.b16 %v1167
    %v1755 = vunpack.c.h.b16 %v1167
    %v1756 = vunpack.c.l.b16 %v1168
    %v1757 = vunpack.c.h.b16 %v1168
    %v1758 = vunpack.c.l.b16 %v1169
    %v1759 = vunpack.c.h.b16 %v1169
    %v1760 = vunpack.c.l.b16 %v1170
    %v1761 = vunpack.c.h.b16 %v1170
    %v1762 = vunpack.c.l.b16 %v1171
    %v1763 = vunpack.c.h.b16 %v1171
    %v1764 = vunpack.c.l.b16 %v1172
    %v1765 = vunpack.c.h.b16 %v1172
    %v1766 = vunpack.c.l.b16 %v1173
    %v1767 = vunpack.c.h.b16 %v1173
    %v1768 = vunpack.c.l.b16 %v1174
    %v1769 = vunpack.c.h.b16 %v1174
    %v1770 = vunpack.c.l.b16 %v1175
    %v1771 = vunpack.c.h.b16 %v1175
    %v1772 = vunpack.c.l.b16 %v1176
    %v1773 = vunpack.c.h.b16 %v1176
    %v1774 = vunpack.c.l.b16 %v1177
    %v1775 = vunpack.c.h.b16 %v1177
    %v1776 = vunpack.c.l.b16 %v1178
    %v1777 = vunpack.c.h.b16 %v1178
    %v1778 = vunpack.c.l.b16 %v1179
    %v1779 = vunpack.c.h.b16 %v1179
    %v1780 = vunpack.c.l.b16 %v1180
    %v1781 = vunpack.c.h.b16 %v1180
    %v1782 = vunpack.c.l.b16 %v1181
    %v1783 = vunpack.c.h.b16 %v1181
    %v1784 = vunpack.c.l.b16 %v1182
    %v1785 = vunpack.c.h.b16 %v1182
    %v1786 = vunpack.c.l.b16 %v1183
    %v1787 = vunpack.c.h.b16 %v1183
    %v1788 = vunpack.c.l.b16 %v1184
    %v1789 = vunpack.c.h.b16 %v1184
    %v1790 = vunpack.c.l.b16 %v1185
    %v1791 = vunpack.c.h.b16 %v1185
    %v1792 = vunpack.c.l.b16 %v1186
    %v1793 = vunpack.c.h.b16 %v1186
    %v1794 = vunpack.c.l.b16 %v1187
    %v1795 = vunpack.c.h.b16 %v1187
    %v1796 = vunpack.c.l.b16 %v1188
    %v1797 = vunpack.c.h.b16 %v1188
    %v1798 = vunpack.c.l.b16 %v1189
    %v1799 = vunpack.c.h.b16 %v1189
    %v1800 = vunpack.c.l.b16 %v1190
    %v1801 = vunpack.c.h.b16 %v1190
    %v1802 = vunpack.c.l.b16 %v1191
    %v1803 = vunpack.c.h.b16 %v1191
    %v1804 = vunpack.c.l.b16 %v1192
    %v1805 = vunpack.c.h.b16 %v1192
    %v1806 = vunpack.c.l.b16 %v1193
    %v1807 = vunpack.c.h.b16 %v1193
    %v1808 = vunpack.c.l.b16 %v1194
    %v1809 = vunpack.c.h.b16 %v1194
    %v1810 = vunpack.c.l.b16 %v1195
    %v1811 = vunpack.c.h.b16 %v1195
    %v1812 = vunpack.c.l.b16 %v1196
    %v1813 = vunpack.c.h.b16 %v1196
    %v1814 = vunpack.c.l.b16 %v1197
    %v1815 = vunpack.c.h.b16 %v1197
    %v1816 = vunpack.c.l.b16 %v1198
    %v1817 = vunpack.c.h.b16 %v1198
    %v1818 = vunpack.c.l.b16 %v1199
    %v1819 = vunpack.c.h.b16 %v1199
    %v1820 = vunpack.c.l.b16 %v1200
    %v1821 = vunpack.c.h.b16 %v1200
    %v1822 = vunpack.c.l.b16 %v1201
    %v1823 = vunpack.c.h.b16 %v1201
    %v1824 = vunpack.c.l.b16 %v1202
    %v1825 = vunpack.c.h.b16 %v1202
    %v1826 = vunpack.c.l.b16 %v1203
    %v1827 = vunpack.c.h.b16 %v1203
    %v1828 = vunpack.c.l.b16 %v1204
    %v1829 = vunpack.c.h.b16 %v1204
    %v1830 = vunpack.c.l.b16 %v1205
    %v1831 = vunpack.c.h.b16 %v1205
    %v1832 = vunpack.c.l.b16 %v1206
    %v1833 = vunpack.c.h.b16 %v1206
    %v1834 = vunpack.c.l.b16 %v1207
    %v1835 = vunpack.c.h.b16 %v1207
    %v1836 = vunpack.c.l.b16 %v1208
    %v1837 = vunpack.c.h.b16 %v1208
    %v1838 = vunpack.c.l.b16 %v1209
    %v1839 = vunpack.c.h.b16 %v1209
    %v1840 = vunpack.c.l.b16 %v1210
    %v1841 = vunpack.c.h.b16 %v1210
    %v1842 = vunpack.c.l.b16 %v1211
    %v1843 = vunpack.c.h.b16 %v1211
    %v1844 = vunpack.c.l.b16 %v1212
    %v1845 = vunpack.c.h.b16 %v1212
    %v1846 = vunpack.c.l.b16 %v1213
    %v1847 = vunpack.c.h.b16 %v1213
    %v1848 = vunpack.c.l.b16 %v1214
    %v1849 = vunpack.c.h.b16 %v1214
    %v1850 = vunpack.c.l.b16 %v1215
    %v1851 = vunpack.c.h.b16 %v1215
    %v1852 = vunpack.c.l.b16 %v1216
    %v1853 = vunpack.c.h.b16 %v1216
    %v1854 = vunpack.c.l.b16 %v1217
    %v1855 = vunpack.c.h.b16 %v1217
    %v1856 = vunpack.c.l.b16 %v1218
    %v1857 = vunpack.c.h.b16 %v1218
    %v1858 = vunpack.c.l.b16 %v1219
    %v1859 = vunpack.c.h.b16 %v1219
    %v1860 = vunpack.c.l.b16 %v1220
    %v1861 = vunpack.c.h.b16 %v1220
    %v1862 = vunpack.c.l.b16 %v1221
    %v1863 = vunpack.c.h.b16 %v1221
    %v1864 = vunpack.c.l.b16 %v1222
    %v1865 = vunpack.c.h.b16 %v1222
    %v1866 = vunpack.c.l.b16 %v1223
    %v1867 = vunpack.c.h.b16 %v1223
    %v1868 = vunpack.c.l.b16 %v1224
    %v1869 = vunpack.c.h.b16 %v1224
    %v1870 = vunpack.c.l.b16 %v1225
    %v1871 = vunpack.c.h.b16 %v1225
    %v1872 = vunpack.c.l.b16 %v1226
    %v1873 = vunpack.c.h.b16 %v1226
    %v1874 = vunpack.c.l.b16 %v1227
    %v1875 = vunpack.c.h.b16 %v1227
    %v1876 = vunpack.c.l.b16 %v1228
    %v1877 = vunpack.c.h.b16 %v1228
    %v1878 = vunpack.c.l.b16 %v1229
    %v1879 = vunpack.c.h.b16 %v1229
    %v1880 = vunpack.c.l.b16 %v1230
    %v1881 = vunpack.c.h.b16 %v1230
    %v1882 = vunpack.c.l.b16 %v1231
    %v1883 = vunpack.c.h.b16 %v1231
    %v1884 = vunpack.c.l.b16 %v1232
    %v1885 = vunpack.c.h.b16 %v1232
    %v1886 = vunpack.c.l.b16 %v1233
    %v1887 = vunpack.c.h.b16 %v1233
    %v1888 = vunpack.c.l.b16 %v1234
    %v1889 = vunpack.c.h.b16 %v1234
    %v1890 = vunpack.c.l.b16 %v1235
    %v1891 = vunpack.c.h.b16 %v1235
    %v1892 = vunpack.c.l.b16 %v1236
    %v1893 = vunpack.c.h.b16 %v1236
    %v1894 = vunpack.c.l.b16 %v1237
    %v1895 = vunpack.c.h.b16 %v1237
    %v1896 = vunpack.c.l.b16 %v1238
    %v1897 = vunpack.c.h.b16 %v1238
    %v1898 = vunpack.c.l.b16 %v1239
    %v1899 = vunpack.c.h.b16 %v1239
    %v1900 = vunpack.c.l.b16 %v1240
    %v1901 = vunpack.c.h.b16 %v1240
    %v1902 = vunpack.c.l.b16 %v1241
    %v1903 = vunpack.c.h.b16 %v1241
    %v1904 = vunpack.c.l.b16 %v1242
    %v1905 = vunpack.c.h.b16 %v1242
    %v1906 = vunpack.c.l.b16 %v1243
    %v1907 = vunpack.c.h.b16 %v1243
    %v1908 = vunpack.c.l.b16 %v1244
    %v1909 = vunpack.c.h.b16 %v1244
    %v1910 = vunpack.c.l.b16 %v1245
    %v1911 = vunpack.c.h.b16 %v1245
    %v1912 = vunpack.c.l.b16 %v1246
    %v1913 = vunpack.c.h.b16 %v1246
    %v1914 = vunpack.c.l.b16 %v1247
    %v1915 = vunpack.c.h.b16 %v1247
    %v1916 = vunpack.c.l.b16 %v1248
    %v1917 = vunpack.c.h.b16 %v1248
    %v1918 = vunpack.c.l.b16 %v1249
    %v1919 = vunpack.c.h.b16 %v1249
    %v1920 = vunpack.c.l.b16 %v1250
    %v1921 = vunpack.c.h.b16 %v1250
    %v1922 = vunpack.c.l.b16 %v1251
    %v1923 = vunpack.c.h.b16 %v1251
    %v1924 = vunpack.c.l.b16 %v1252
    %v1925 = vunpack.c.h.b16 %v1252
    %v1926 = vunpack.c.l.b16 %v1253
    %v1927 = vunpack.c.h.b16 %v1253
    %v1928 = vunpack.c.l.b16 %v1254
    %v1929 = vunpack.c.h.b16 %v1254
    %v1930 = vunpack.c.l.b16 %v1255
    %v1931 = vunpack.c.h.b16 %v1255
    %v1932 = vunpack.c.l.b16 %v1256
    %v1933 = vunpack.c.h.b16 %v1256
    %v1934 = vunpack.c.l.b16 %v1257
    %v1935 = vunpack.c.h.b16 %v1257
    %v1936 = vunpack.c.l.b16 %v1258
    %v1937 = vunpack.c.h.b16 %v1258
    %v1938 = vunpack.c.l.b16 %v1259
    %v1939 = vunpack.c.h.b16 %v1259
    %v1940 = vunpack.c.l.b16 %v1260
    %v1941 = vunpack.c.h.b16 %v1260
    %v1942 = vunpack.c.l.b16 %v1261
    %v1943 = vunpack.c.h.b16 %v1261
    %v1944 = vunpack.c.l.b16 %v1262
    %v1945 = vunpack.c.h.b16 %v1262
    %v1946 = vunpack.c.l.b16 %v1263
    %v1947 = vunpack.c.h.b16 %v1263
    %v1948 = vunpack.c.l.b16 %v1264
    %v1949 = vunpack.c.h.b16 %v1264
    %v1950 = vunpack.c.l.b16 %v1265
    %v1951 = vunpack.c.h.b16 %v1265
    %v1952 = vunpack.c.l.b16 %v1266
    %v1953 = vunpack.c.h.b16 %v1266
    %v1954 = vunpack.c.l.b16 %v1267
    %v1955 = vunpack.c.h.b16 %v1267
    %v1956 = vunpack.c.l.b16 %v1268
    %v1957 = vunpack.c.h.b16 %v1268
    %v1958 = vunpack.c.l.b16 %v1269
    %v1959 = vunpack.c.h.b16 %v1269
    %v1960 = vunpack.c.l.b16 %v1270
    %v1961 = vunpack.c.h.b16 %v1270
    %v1962 = vunpack.c.l.b16 %v1271
    %v1963 = vunpack.c.h.b16 %v1271
    %v1964 = vunpack.c.l.b16 %v1272
    %v1965 = vunpack.c.h.b16 %v1272
    %v1966 = vunpack.c.l.b16 %v1273
    %v1967 = vunpack.c.h.b16 %v1273
    %v1968 = vunpack.c.l.b16 %v1274
    %v1969 = vunpack.c.h.b16 %v1274
    %v1970 = vunpack.c.l.b16 %v1275
    %v1971 = vunpack.c.h.b16 %v1275
    %v1972 = vunpack.c.l.b16 %v1276
    %v1973 = vunpack.c.h.b16 %v1276
    %v1974 = vunpack.c.l.b16 %v1277
    %v1975 = vunpack.c.h.b16 %v1277
    %v1976 = vunpack.c.l.b16 %v1278
    %v1977 = vunpack.c.h.b16 %v1278
    %v1978 = vunpack.c.l.b16 %v1279
    %v1979 = vunpack.c.h.b16 %v1279
    %v1980 = vunpack.c.l.b16 %v1280
    %v1981 = vunpack.c.h.b16 %v1280
    %v1982 = vunpack.c.l.b16 %v1281
    %v1983 = vunpack.c.h.b16 %v1281
    %v1984 = vunpack.c.l.b16 %v1282
    %v1985 = vunpack.c.h.b16 %v1282
    %v1986 = vunpack.c.l.b16 %v1283
    %v1987 = vunpack.c.h.b16 %v1283
    %v1988 = vunpack.c.l.b16 %v1284
    %v1989 = vunpack.c.h.b16 %v1284
    %v1990 = vunpack.c.l.b16 %v1285
    %v1991 = vunpack.c.h.b16 %v1285
    %v1992 = vunpack.c.l.b16 %v1286
    %v1993 = vunpack.c.h.b16 %v1286
    %v1994 = vunpack.c.l.b16 %v1287
    %v1995 = vunpack.c.h.b16 %v1287
    %v1996 = vunpack.c.l.b16 %v1288
    %v1997 = vunpack.c.h.b16 %v1288
    %v1998 = vunpack.c.l.b16 %v1289
    %v1999 = vunpack.c.h.b16 %v1289
    %v2000 = vunpack.c.l.b16 %v1290
    %v2001 = vunpack.c.h.b16 %v1290
    %v2002 = vunpack.c.l.b16 %v1291
    %v2003 = vunpack.c.h.b16 %v1291
    %v2004 = vunpack.c.l.b16 %v1292
    %v2005 = vunpack.c.h.b16 %v1292
    %v2006 = vunpack.c.l.b16 %v1293
    %v2007 = vunpack.c.h.b16 %v1293
    %v2008 = vunpack.c.l.b16 %v1294
    %v2009 = vunpack.c.h.b16 %v1294
    %v2010 = vunpack.c.l.b16 %v1295
    %v2011 = vunpack.c.h.b16 %v1295
    %v2012 = vunpack.c.l.b16 %v1296
    %v2013 = vunpack.c.h.b16 %v1296
    %v2014 = vunpack.c.l.b16 %v1297
    %v2015 = vunpack.c.h.b16 %v1297
    %v2016 = vunpack.c.l.b16 %v1298
    %v2017 = vunpack.c.h.b16 %v1298
    %v2018 = vunpack.c.l.b16 %v1299
    %v2019 = vunpack.c.h.b16 %v1299
    %v2020 = vunpack.c.l.b16 %v1300
    %v2021 = vunpack.c.h.b16 %v1300
    %v2022 = vunpack.c.l.b16 %v1301
    %v2023 = vunpack.c.h.b16 %v1301
    %v2024 = vunpack.c.l.b16 %v1302
    %v2025 = vunpack.c.h.b16 %v1302
    %v2026 = vunpack.c.l.b16 %v1303
    %v2027 = vunpack.c.h.b16 %v1303
    %v2028 = vunpack.c.l.b16 %v1304
    %v2029 = vunpack.c.h.b16 %v1304
    %v2030 = vunpack.c.l.b16 %v1305
    %v2031 = vunpack.c.h.b16 %v1305
    %v2032 = vunpack.c.l.b16 %v1306
    %v2033 = vunpack.c.h.b16 %v1306
    %v2034 = vunpack.c.l.b16 %v1307
    %v2035 = vunpack.c.h.b16 %v1307
    %v2036 = vunpack.c.l.b16 %v1308
    %v2037 = vunpack.c.h.b16 %v1308
    %v2038 = vunpack.c.l.b16 %v1309
    %v2039 = vunpack.c.h.b16 %v1309
    %v2040 = vunpack.c.l.b16 %v1310
    %v2041 = vunpack.c.h.b16 %v1310
    %v2042 = vunpack.c.l.b16 %v1311
    %v2043 = vunpack.c.h.b16 %v1311
    %v2044 = vunpack.c.l.b16 %v1312
    %v2045 = vunpack.c.h.b16 %v1312
    %v2046 = vunpack.c.l.b16 %v1313
    %v2047 = vunpack.c.h.b16 %v1313
    %v2048 = vunpack.c.l.b16 %v1314
    %v2049 = vunpack.c.h.b16 %v1314
    %v2050 = vunpack.c.l.b16 %v1315
    %v2051 = vunpack.c.h.b16 %v1315
    %v2052 = vunpack.c.l.b16 %v1316
    %v2053 = vunpack.c.h.b16 %v1316
    %v2054 = vunpack.c.l.b16 %v1317
    %v2055 = vunpack.c.h.b16 %v1317
    %v2056 = vunpack.c.l.b16 %v1318
    %v2057 = vunpack.c.h.b16 %v1318
    %v2058 = vunpack.c.l.b16 %v1319
    %v2059 = vunpack.c.h.b16 %v1319
    %v2060 = vunpack.c.l.b16 %v1320
    %v2061 = vunpack.c.h.b16 %v1320
    %v2062 = vunpack.c.l.b16 %v1321
    %v2063 = vunpack.c.h.b16 %v1321
    %v2064 = vunpack.c.l.b16 %v1322
    %v2065 = vunpack.c.h.b16 %v1322
    %v2066 = vunpack.c.l.b16 %v1323
    %v2067 = vunpack.c.h.b16 %v1323
    %v2068 = vunpack.c.l.b16 %v1324
    %v2069 = vunpack.c.h.b16 %v1324
    %v2070 = vunpack.c.l.b16 %v1325
    %v2071 = vunpack.c.h.b16 %v1325
    %v2072 = vunpack.c.l.b16 %v1326
    %v2073 = vunpack.c.h.b16 %v1326
    %v2074 = vunpack.c.l.b16 %v1327
    %v2075 = vunpack.c.h.b16 %v1327
    %v2076 = vunpack.c.l.b16 %v1328
    %v2077 = vunpack.c.h.b16 %v1328
    %v2078 = vunpack.c.l.b16 %v1329
    %v2079 = vunpack.c.h.b16 %v1329
    %v2080 = vunpack.c.l.b16 %v1330
    %v2081 = vunpack.c.h.b16 %v1330
    %v2082 = vunpack.c.l.b16 %v1331
    %v2083 = vunpack.c.h.b16 %v1331
    %v2084 = vunpack.c.l.b16 %v1332
    %v2085 = vunpack.c.h.b16 %v1332
    %v2086 = vunpack.c.l.b16 %v1333
    %v2087 = vunpack.c.h.b16 %v1333
    %v2088 = vunpack.c.l.b16 %v1334
    %v2089 = vunpack.c.h.b16 %v1334
    %v2090 = vunpack.c.l.b16 %v1335
    %v2091 = vunpack.c.h.b16 %v1335
    %v2092 = vunpack.c.l.b16 %v1336
    %v2093 = vunpack.c.h.b16 %v1336
    %v2094 = vunpack.c.l.b16 %v1337
    %v2095 = vunpack.c.h.b16 %v1337
    %v2096 = vunpack.c.l.b16 %v1338
    %v2097 = vunpack.c.h.b16 %v1338
    %v2098 = vunpack.c.l.b16 %v1339
    %v2099 = vunpack.c.h.b16 %v1339
    %v2100 = vunpack.c.l.b16 %v1340
    %v2101 = vunpack.c.h.b16 %v1340
    %v2102 = vunpack.c.l.b16 %v1341
    %v2103 = vunpack.c.h.b16 %v1341
    %v2104 = vunpack.c.l.b16 %v1342
    %v2105 = vunpack.c.h.b16 %v1342
    %v2106 = vunpack.c.l.b16 %v1343
    %v2107 = vunpack.c.h.b16 %v1343
    %v2108 = vunpack.c.l.b16 %v1344
    %v2109 = vunpack.c.h.b16 %v1344
    %v2110 = vunpack.c.l.b16 %v1345
    %v2111 = vunpack.c.h.b16 %v1345
    %v2112 = vunpack.c.l.b16 %v1346
    %v2113 = vunpack.c.h.b16 %v1346
    %v2114 = vunpack.c.l.b16 %v1347
    %v2115 = vunpack.c.h.b16 %v1347
    %v2116 = vunpack.c.l.b16 %v1348
    %v2117 = vunpack.c.h.b16 %v1348
    %v2118 = vunpack.c.l.b16 %v1349
    %v2119 = vunpack.c.h.b16 %v1349
    %v2120 = vunpack.c.l.b16 %v1350
    %v2121 = vunpack.c.h.b16 %v1350
    %v2122 = vunpack.c.l.b16 %v1351
    %v2123 = vunpack.c.h.b16 %v1351
    %v2124 = vunpack.c.l.b16 %v1352
    %v2125 = vunpack.c.h.b16 %v1352
    %v2126 = vunpack.c.l.b16 %v1353
    %v2127 = vunpack.c.h.b16 %v1353
    %v2128 = vunpack.c.l.b16 %v1354
    %v2129 = vunpack.c.h.b16 %v1354
    %v2130 = vunpack.c.l.b16 %v1355
    %v2131 = vunpack.c.h.b16 %v1355
    %v2132 = vunpack.c.l.b16 %v1356
    %v2133 = vunpack.c.h.b16 %v1356
    %v2134 = vunpack.c.l.b16 %v1357
    %v2135 = vunpack.c.h.b16 %v1357
    %v2136 = vunpack.c.l.b16 %v1358
    %v2137 = vunpack.c.h.b16 %v1358
    %v2138 = vunpack.c.l.b16 %v1359
    %v2139 = vunpack.c.h.b16 %v1359
    %v2140 = vunpack.c.l.b16 %v1360
    %v2141 = vunpack.c.h.b16 %v1360
    %v2142 = vunpack.c.l.b16 %v1361
    %v2143 = vunpack.c.h.b16 %v1361
    %v2144 = vunpack.c.l.b16 %v1362
    %v2145 = vunpack.c.h.b16 %v1362
    %v2146 = vunpack.c.l.b16 %v1363
    %v2147 = vunpack.c.h.b16 %v1363
    %v2148 = vunpack.c.l.b16 %v1364
    %v2149 = vunpack.c.h.b16 %v1364
    %v2150 = vunpack.c.l.b16 %v1365
    %v2151 = vunpack.c.h.b16 %v1365
    %v2152 = vunpack.c.l.b16 %v1366
    %v2153 = vunpack.c.h.b16 %v1366
    %v2154 = vunpack.c.l.b16 %v1367
    %v2155 = vunpack.c.h.b16 %v1367
    %v2156 = vunpack.c.l.b16 %v1368
    %v2157 = vunpack.c.h.b16 %v1368
    %v2158 = vunpack.c.l.b16 %v1369
    %v2159 = vunpack.c.h.b16 %v1369
    %v2160 = vunpack.c.l.b16 %v1370
    %v2161 = vunpack.c.h.b16 %v1370
    %v2162 = vunpack.c.l.b16 %v1371
    %v2163 = vunpack.c.h.b16 %v1371
    %v2164 = vunpack.c.l.b16 %v1372
    %v2165 = vunpack.c.h.b16 %v1372
    %v2166 = vunpack.c.l.b16 %v1373
    %v2167 = vunpack.c.h.b16 %v1373
    %v2168 = vunpack.c.l.b16 %v1374
    %v2169 = vunpack.c.h.b16 %v1374
    %v2170 = vunpack.c.l.b16 %v1375
    %v2171 = vunpack.c.h.b16 %v1375
    %v2172 = vunpack.c.l.b16 %v1376
    %v2173 = vunpack.c.h.b16 %v1376
    %v2174 = vunpack.c.l.b16 %v1377
    %v2175 = vunpack.c.h.b16 %v1377
    %v2176 = vunpack.c.l.b16 %v1378
    %v2177 = vunpack.c.h.b16 %v1378
    %v2178 = vunpack.c.l.b16 %v1379
    %v2179 = vunpack.c.h.b16 %v1379
    %v2180 = vunpack.c.l.b16 %v1380
    %v2181 = vunpack.c.h.b16 %v1380
    %v2182 = vunpack.c.l.b16 %v1381
    %v2183 = vunpack.c.h.b16 %v1381
    %v2184 = vunpack.c.l.b16 %v1382
    %v2185 = vunpack.c.h.b16 %v1382
    %v2186 = vunpack.c.l.b16 %v1383
    %v2187 = vunpack.c.h.b16 %v1383
    %v2188 = vunpack.c.l.b16 %v1384
    %v2189 = vunpack.c.h.b16 %v1384
    %v2190 = vunpack.c.l.b16 %v1385
    %v2191 = vunpack.c.h.b16 %v1385
    %v2192 = vunpack.c.l.b16 %v1386
    %v2193 = vunpack.c.h.b16 %v1386
    %v2194 = vunpack.c.l.b16 %v1387
    %v2195 = vunpack.c.h.b16 %v1387
    %v2196 = vunpack.c.l.b16 %v1388
    %v2197 = vunpack.c.h.b16 %v1388
    %v2198 = vunpack.c.l.b16 %v1389
    %v2199 = vunpack.c.h.b16 %v1389
    %v2200 = vpack.c.b16 %v1696, %v1688
    %v2201 = vpack.c.b16 %v1697, %v1689
    %v2202 = vpack.c.b16 %v1698, %v1690
    %v2203 = vpack.c.b16 %v1699, %v1691
    %v2204 = vpack.c.b16 %v1700, %v1692
    %v2205 = vpack.c.b16 %v1701, %v1693
    %v2206 = vpack.c.b16 %v1702, %v1694
    %v2207 = vpack.c.b16 %v1703, %v1695
    %v2208 = vpack.c.b16 %v1712, %v1704
    %v2209 = vpack.c.b16 %v1713, %v1705
    %v2210 = vpack.c.b16 %v1714, %v1706
    %v2211 = vpack.c.b16 %v1715, %v1707
    %v2212 = vpack.c.b16 %v1716, %v1708
    %v2213 = vpack.c.b16 %v1717, %v1709
    %v2214 = vpack.c.b16 %v1718, %v1710
    %v2215 = vpack.c.b16 %v1719, %v1711
    %v2216 = vpack.c.b16 %v1728, %v1720
    %v2217 = vpack.c.b16 %v1729, %v1721
    %v2218 = vpack.c.b16 %v1730, %v1722
    %v2219 = vpack.c.b16 %v1731, %v1723
    %v2220 = vpack.c.b16 %v1732, %v1724
    %v2221 = vpack.c.b16 %v1733, %v1725
    %v2222 = vpack.c.b16 %v1734, %v1726
    %v2223 = vpack.c.b16 %v1735, %v1727
    %v2224 = vpack.c.b16 %v1744, %v1736
    %v2225 = vpack.c.b16 %v1745, %v1737
    %v2226 = vpack.c.b16 %v1746, %v1738
    %v2227 = vpack.c.b16 %v1747, %v1739
    %v2228 = vpack.c.b16 %v1748, %v1740
    %v2229 = vpack.c.b16 %v1749, %v1741
    %v2230 = vpack.c.b16 %v1750, %v1742
    %v2231 = vpack.c.b16 %v1751, %v1743
    %v2232 = vpack.c.b16 %v1760, %v1752
    %v2233 = vpack.c.b16 %v1761, %v1753
    %v2234 = vpack.c.b16 %v1762, %v1754
    %v2235 = vpack.c.b16 %v1763, %v1755
    %v2236 = vpack.c.b16 %v1764, %v1756
    %v2237 = vpack.c.b16 %v1765, %v1757
    %v2238 = vpack.c.b16 %v1766, %v1758
    %v2239 = vpack.c.b16 %v1767, %v1759
    %v2240 = vpack.c.b16 %v1776, %v1768
    %v2241 = vpack.c.b16 %v1777, %v1769
    %v2242 = vpack.c.b16 %v1778, %v1770
    %v2243 = vpack.c.b16 %v1779, %v1771
    %v2244 = vpack.c.b16 %v1780, %v1772
    %v2245 = vpack.c.b16 %v1781, %v1773
    %v2246 = vpack.c.b16 %v1782, %v1774
    %v2247 = vpack.c.b16 %v1783, %v1775
    %v2248 = vpack.c.b16 %v1792, %v1784
    %v2249 = vpack.c.b16 %v1793, %v1785
    %v2250 = vpack.c.b16 %v1794, %v1786
    %v2251 = vpack.c.b16 %v1795, %v1787
    %v2252 = vpack.c.b16 %v1796, %v1788
    %v2253 = vpack.c.b16 %v1797, %v1789
    %v2254 = vpack.c.b16 %v1798, %v1790
    %v2255 = vpack.c.b16 %v1799, %v1791
    %v2256 = vpack.c.b16 %v1808, %v1800
    %v2257 = vpack.c.b16 %v1809, %v1801
    %v2258 = vpack.c.b16 %v1810, %v1802
    %v2259 = vpack.c.b16 %v1811, %v1803
    %v2260 = vpack.c.b16 %v1812, %v1804
    %v2261 = vpack.c.b16 %v1813, %v1805
    %v2262 = vpack.c.b16 %v1814, %v1806
    %v2263 = vpack.c.b16 %v1815, %v1807
    %v2264 = vpack.c.b16 %v1824, %v1816
    %v2265 = vpack.c.b16 %v1825, %v1817
    %v2266 = vpack.c.b16 %v1826, %v1818
    %v2267 = vpack.c.b16 %v1827, %v1819
    %v2268 = vpack.c.b16 %v1828, %v1820
    %v2269 = vpack.c.b16 %v1829, %v1821
    %v2270 = vpack.c.b16 %v1830, %v1822
    %v2271 = vpack.c.b16 %v1831, %v1823
    %v2272 = vpack.c.b16 %v1840, %v1832
    %v2273 = vpack.c.b16 %v1841, %v1833
    %v2274 = vpack.c.b16 %v1842, %v1834
    %v2275 = vpack.c.b16 %v1843, %v1835
    %v2276 = vpack.c.b16 %v1844, %v1836
    %v2277 = vpack.c.b16 %v1845, %v1837
    %v2278 = vpack.c.b16 %v1846, %v1838
    %v2279 = vpack.c.b16 %v1847, %v1839
    %v2280 = vpack.c.b16 %v1856, %v1848
    %v2281 = vpack.c.b16 %v1857, %v1849
    %v2282 = vpack.c.b16 %v1858, %v1850
    %v2283 = vpack.c.b16 %v1859, %v1851
    %v2284 = vpack.c.b16 %v1860, %v1852
    %v2285 = vpack.c.b16 %v1861, %v1853
    %v2286 = vpack.c.b16 %v1862, %v1854
    %v2287 = vpack.c.b16 %v1863, %v1855
    %v2288 = vpack.c.b16 %v1872, %v1864
    %v2289 = vpack.c.b16 %v1873, %v1865
    %v2290 = vpack.c.b16 %v1874, %v1866
    %v2291 = vpack.c.b16 %v1875, %v1867
    %v2292 = vpack.c.b16 %v1876, %v1868
    %v2293 = vpack.c.b16 %v1877, %v1869
    %v2294 = vpack.c.b16 %v1878, %v1870
    %v2295 = vpack.c.b16 %v1879, %v1871
    %v2296 = vpack.c.b16 %v1888, %v1880
    %v2297 = vpack.c.b16 %v1889, %v1881
    %v2298 = vpack.c.b16 %v1890, %v1882
    %v2299 = vpack.c.b16 %v1891, %v1883
    %v2300 = vpack.c.b16 %v1892, %v1884
    %v2301 = vpack.c.b16 %v1893, %v1885
    %v2302 = vpack.c.b16 %v1894, %v1886
    %v2303 = vpack.c.b16 %v1895, %v1887
    %v2304 = vpack.c.b16 %v1904, %v1896
    %v2305 = vpack.c.b16 %v1905, %v1897
    %v2306 = vpack.c.b16 %v1906, %v1898
    %v2307 = vpack.c.b16 %v1907, %v1899
    %v2308 = vpack.c.b16 %v1908, %v1900
    %v2309 = vpack.c.b16 %v1909, %v1901
    %v2310 = vpack.c.b16 %v1910, %v1902
    %v2311 = vpack.c.b16 %v1911, %v1903
    %v2312 = vpack.c.b16 %v1920, %v1912
    %v2313 = vpack.c.b16 %v1921, %v1913
    %v2314 = vpack.c.b16 %v1922, %v1914
    %v2315 = vpack.c.b16 %v1923, %v1915
    %v2316 = vpack.c.b16 %v1924, %v1916
    %v2317 = vpack.c.b16 %v1925, %v1917
    %v2318 = vpack.c.b16 %v1926, %v1918
    %v2319 = vpack.c.b16 %v1927, %v1919
    %v2320 = vpack.c.b16 %v1936, %v1928
    %v2321 = vpack.c.b16 %v1937, %v1929
    %v2322 = vpack.c.b16 %v1938, %v1930
    %v2323 = vpack.c.b16 %v1939, %v1931
    %v2324 = vpack.c.b16 %v1940, %v1932
    %v2325 = vpack.c.b16 %v1941, %v1933
    %v2326 = vpack.c.b16 %v1942, %v1934
    %v2327 = vpack.c.b16 %v1943, %v1935
    %v2328 = vpack.c.b16 %v1952, %v1944
    %v2329 = vpack.c.b16 %v1953, %v1945
    %v2330 = vpack.c.b16 %v1954, %v1946
    %v2331 = vpack.c.b16 %v1955, %v1947
    %v2332 = vpack.c.b16 %v1956, %v1948
    %v2333 = vpack.c.b16 %v1957, %v1949
    %v2334 = vpack.c.b16 %v1958, %v1950
    %v2335 = vpack.c.b16 %v1959, %v1951
    %v2336 = vpack.c.b16 %v1968, %v1960
    %v2337 = vpack.c.b16 %v1969, %v1961
    %v2338 = vpack.c.b16 %v1970, %v1962
    %v2339 = vpack.c.b16 %v1971, %v1963
    %v2340 = vpack.c.b16 %v1972, %v1964
    %v2341 = vpack.c.b16 %v1973, %v1965
    %v2342 = vpack.c.b16 %v1974, %v1966
    %v2343 = vpack.c.b16 %v1975, %v1967
    %v2344 = vpack.c.b16 %v1984, %v1976
    %v2345 = vpack.c.b16 %v1985, %v1977
    %v2346 = vpack.c.b16 %v1986, %v1978
    %v2347 = vpack.c.b16 %v1987, %v1979
    %v2348 = vpack.c.b16 %v1988, %v1980
    %v2349 = vpack.c.b16 %v1989, %v1981
    %v2350 = vpack.c.b16 %v1990, %v1982
    %v2351 = vpack.c.b16 %v1991, %v1983
    %v2352 = vpack.c.b16 %v2000, %v1992
    %v2353 = vpack.c.b16 %v2001, %v1993
    %v2354 = vpack.c.b16 %v2002, %v1994
    %v2355 = vpack.c.b16 %v2003, %v1995
    %v2356 = vpack.c.b16 %v2004, %v1996
    %v2357 = vpack.c.b16 %v2005, %v1997
    %v2358 = vpack.c.b16 %v2006, %v1998
    %v2359 = vpack.c.b16 %v2007, %v1999
    %v2360 = vpack.c.b16 %v2016, %v2008
    %v2361 = vpack.c.b16 %v2017, %v2009
    %v2362 = vpack.c.b16 %v2018, %v2010
    %v2363 = vpack.c.b16 %v2019, %v2011
    %v2364 = vpack.c.b16 %v2020, %v2012
    %v2365 = vpack.c.b16 %v2021, %v2013
    %v2366 = vpack.c.b16 %v2022, %v2014
    %v2367 = vpack.c.b16 %v2023, %v2015
    %v2368 = vpack.c.b16 %v2032, %v2024
    %v2369 = vpack.c.b16 %v2033, %v2025
    %v2370 = vpack.c.b16 %v2034, %v2026
    %v2371 = vpack.c.b16 %v2035, %v2027
    %v2372 = vpack.c.b16 %v2036, %v2028
    %v2373 = vpack.c.b16 %v2037, %v2029
    %v2374 = vpack.c.b16 %v2038, %v2030
    %v2375 = vpack.c.b16 %v2039, %v2031
    %v2376 = vpack.c.b16 %v2048, %v2040
    %v2377 = vpack.c.b16 %v2049, %v2041
    %v2378 = vpack.c.b16 %v2050, %v2042
    %v2379 = vpack.c.b16 %v2051, %v2043
    %v2380 = vpack.c.b16 %v2052, %v2044
    %v2381 = vpack.c.b16 %v2053, %v2045
    %v2382 = vpack.c.b16 %v2054, %v2046
    %v2383 = vpack.c.b16 %v2055, %v2047
    %v2384 = vpack.c.b16 %v2064, %v2056
    %v2385 = vpack.c.b16 %v2065, %v2057
    %v2386 = vpack.c.b16 %v2066, %v2058
    %v2387 = vpack.c.b16 %v2067, %v2059
    %v2388 = vpack.c.b16 %v2068, %v2060
    %v2389 = vpack.c.b16 %v2069, %v2061
    %v2390 = vpack.c.b16 %v2070, %v2062
    %v2391 = vpack.c.b16 %v2071, %v2063
    %v2392 = vpack.c.b16 %v2080, %v2072
    %v2393 = vpack.c.b16 %v2081, %v2073
    %v2394 = vpack.c.b16 %v2082, %v2074
    %v2395 = vpack.c.b16 %v2083, %v2075
    %v2396 = vpack.c.b16 %v2084, %v2076
    %v2397 = vpack.c.b16 %v2085, %v2077
    %v2398 = vpack.c.b16 %v2086, %v2078
    %v2399 = vpack.c.b16 %v2087, %v2079
    %v2400 = vpack.c.b16 %v2096, %v2088
    %v2401 = vpack.c.b16 %v2097, %v2089
    %v2402 = vpack.c.b16 %v2098, %v2090
    %v2403 = vpack.c.b16 %v2099, %v2091
    %v2404 = vpack.c.b16 %v2100, %v2092
    %v2405 = vpack.c.b16 %v2101, %v2093
    %v2406 = vpack.c.b16 %v2102, %v2094
    %v2407 = vpack.c.b16 %v2103, %v2095
    %v2408 = vpack.c.b16 %v2112, %v2104
    %v2409 = vpack.c.b16 %v2113, %v2105
    %v2410 = vpack.c.b16 %v2114, %v2106
    %v2411 = vpack.c.b16 %v2115, %v2107
    %v2412 = vpack.c.b16 %v2116, %v2108
    %v2413 = vpack.c.b16 %v2117, %v2109
    %v2414 = vpack.c.b16 %v2118, %v2110
    %v2415 = vpack.c.b16 %v2119, %v2111
    %v2416 = vpack.c.b16 %v2128, %v2120
    %v2417 = vpack.c.b16 %v2129, %v2121
    %v2418 = vpack.c.b16 %v2130, %v2122
    %v2419 = vpack.c.b16 %v2131, %v2123
    %v2420 = vpack.c.b16 %v2132, %v2124
    %v2421 = vpack.c.b16 %v2133, %v2125
    %v2422 = vpack.c.b16 %v2134, %v2126
    %v2423 = vpack.c.b16 %v2135, %v2127
    %v2424 = vpack.c.b16 %v2144, %v2136
    %v2425 = vpack.c.b16 %v2145, %v2137
    %v2426 = vpack.c.b16 %v2146, %v2138
    %v2427 = vpack.c.b16 %v2147, %v2139
    %v2428 = vpack.c.b16 %v2148, %v2140
    %v2429 = vpack.c.b16 %v2149, %v2141
    %v2430 = vpack.c.b16 %v2150, %v2142
    %v2431 = vpack.c.b16 %v2151, %v2143
    %v2432 = vpack.c.b16 %v2160, %v2152
    %v2433 = vpack.c.b16 %v2161, %v2153
    %v2434 = vpack.c.b16 %v2162, %v2154
    %v2435 = vpack.c.b16 %v2163, %v2155
    %v2436 = vpack.c.b16 %v2164, %v2156
    %v2437 = vpack.c.b16 %v2165, %v2157
    %v2438 = vpack.c.b16 %v2166, %v2158
    %v2439 = vpack.c.b16 %v2167, %v2159
    %v2440 = vpack.c.b16 %v2176, %v2168
    %v2441 = vpack.c.b16 %v2177, %v2169
    %v2442 = vpack.c.b16 %v2178, %v2170
    %v2443 = vpack.c.b16 %v2179, %v2171
    %v2444 = vpack.c.b16 %v2180, %v2172
    %v2445 = vpack.c.b16 %v2181, %v2173
    %v2446 = vpack.c.b16 %v2182, %v2174
    %v2447 = vpack.c.b16 %v2183, %v2175
    %v2448 = vpack.c.b16 %v2192, %v2184
    %v2449 = vpack.c.b16 %v2193, %v2185
    %v2450 = vpack.c.b16 %v2194, %v2186
    %v2451 = vpack.c.b16 %v2195, %v2187
    %v2452 = vpack.c.b16 %v2196, %v2188
    %v2453 = vpack.c.b16 %v2197, %v2189
    %v2454 = vpack.c.b16 %v2198, %v2190
    %v2455 = vpack.c.b16 %v2199, %v2191
    %2712 = vmatprep.subr.bf16.mxu0 %v2201
    %2713 = vmatpush1.bf16.msra.mxu0 %v2200
    %2714 = vmatprep.subr.bf16.mxu0 %v2209
    %2715 = vmatpush1.bf16.msra.mxu0 %v2208
    %2716 = vmatprep.subr.bf16.mxu0 %v2217
    %2717 = vmatpush1.bf16.msra.mxu0 %v2216
    %2718 = vmatprep.subr.bf16.mxu0 %v2225
    %2719 = vmatpush1.bf16.msra.mxu0 %v2224
    %2720 = vmatprep.subr.bf16.mxu0 %v2233
    %2721 = vmatpush1.bf16.msra.mxu0 %v2232
    %2722 = vmatprep.subr.bf16.mxu0 %v2241
    %2723 = vmatpush1.bf16.msra.mxu0 %v2240
    %2724 = vmatprep.subr.bf16.mxu0 %v2249
    %2725 = vmatpush1.bf16.msra.mxu0 %v2248
    %2726 = vmatprep.subr.bf16.mxu0 %v2257
    %2727 = vmatpush1.bf16.msra.mxu0 %v2256
    %2728 = vmatprep.subr.bf16.mxu0 %v2265
    %2729 = vmatpush1.bf16.msra.mxu0 %v2264
    %2730 = vmatprep.subr.bf16.mxu0 %v2273
    %2731 = vmatpush1.bf16.msra.mxu0 %v2272
    %2732 = vmatprep.subr.bf16.mxu0 %v2281
    %2733 = vmatpush1.bf16.msra.mxu0 %v2280
    %2734 = vmatprep.subr.bf16.mxu0 %v2289
    %2735 = vmatpush1.bf16.msra.mxu0 %v2288
    %2736 = vmatprep.subr.bf16.mxu0 %v2297
    %2737 = vmatpush1.bf16.msra.mxu0 %v2296
    %2738 = vmatprep.subr.bf16.mxu0 %v2305
    %2739 = vmatpush1.bf16.msra.mxu0 %v2304
    %2740 = vmatprep.subr.bf16.mxu0 %v2313
    %2741 = vmatpush1.bf16.msra.mxu0 %v2312
    %2742 = vmatprep.subr.bf16.mxu0 %v2321
    %2743 = vmatpush1.bf16.msra.mxu0 %v2320
    %2744 = vmatprep.mubr.bf16.mxu0 %v1131
    %2745 = vmatmul.mubr.bf16.gmra.mrb[0].mxu0 %v1130
    %v2746 = vpop.f32.mrb[0].mxu0
    %v2747 = vadd.f32 %v1395, %v2746
    %v2748 = vpop.f32.mrb[0].mxu0
    %v2749 = vadd.f32 %v1399, %v2748
    %v2750 = vpop.f32.mrb[0].mxu0
    %v2751 = vpop.f32.mrb[0].mxu0
    %2752 = vdwg.mxu0
    %2753 = vmatprep.subr.bf16.mxu0 %v2329
    %2754 = vmatpush1.bf16.msra.mxu0 %v2328
    %2755 = vmatprep.subr.bf16.mxu0 %v2337
    %2756 = vmatpush1.bf16.msra.mxu0 %v2336
    %2757 = vmatprep.subr.bf16.mxu0 %v2345
    %2758 = vmatpush1.bf16.msra.mxu0 %v2344
    %2759 = vmatprep.subr.bf16.mxu0 %v2353
    %2760 = vmatpush1.bf16.msra.mxu0 %v2352
    %2761 = vmatprep.subr.bf16.mxu0 %v2361
    %2762 = vmatpush1.bf16.msra.mxu0 %v2360
    %2763 = vmatprep.subr.bf16.mxu0 %v2369
    %2764 = vmatpush1.bf16.msra.mxu0 %v2368
    %2765 = vmatprep.subr.bf16.mxu0 %v2377
    %2766 = vmatpush1.bf16.msra.mxu0 %v2376
    %2767 = vmatprep.subr.bf16.mxu0 %v2385
    %2768 = vmatpush1.bf16.msra.mxu0 %v2384
    %2769 = vmatprep.subr.bf16.mxu0 %v2393
    %2770 = vmatpush1.bf16.msra.mxu0 %v2392
    %2771 = vmatprep.subr.bf16.mxu0 %v2401
    %2772 = vmatpush1.bf16.msra.mxu0 %v2400
    %2773 = vmatprep.subr.bf16.mxu0 %v2409
    %2774 = vmatpush1.bf16.msra.mxu0 %v2408
    %2775 = vmatprep.subr.bf16.mxu0 %v2417
    %2776 = vmatpush1.bf16.msra.mxu0 %v2416
    %2777 = vmatprep.subr.bf16.mxu0 %v2425
    %2778 = vmatpush1.bf16.msra.mxu0 %v2424
    %2779 = vmatprep.subr.bf16.mxu0 %v2433
    %2780 = vmatpush1.bf16.msra.mxu0 %v2432
    %2781 = vmatprep.subr.bf16.mxu0 %v2441
    %2782 = vmatpush1.bf16.msra.mxu0 %v2440
    %2783 = vmatprep.subr.bf16.mxu0 %v2449
    %2784 = vmatpush1.bf16.msra.mxu0 %v2448
    %2785 = vmatprep.mubr.bf16.mxu0 %v1133
    %2786 = vmatmul.mubr.bf16.gmra.mrb[0].mxu0 %v1132
    %v2787 = vpop.f32.mrb[0].mxu0
    %v2788 = vadd.f32 %v2747, %v2787
    %v2789 = vpop.f32.mrb[0].mxu0
    %v2790 = vadd.f32 %v2749, %v2789
    %v2791 = vpop.f32.mrb[0].mxu0
    %v2792 = vpop.f32.mrb[0].mxu0
    %2793 = vdwg.mxu0
    %2794 = vmatprep.subr.bf16.mxu0 %v2203
    %2795 = vmatpush1.bf16.msra.mxu0 %v2202
    %2796 = vmatprep.subr.bf16.mxu0 %v2211
    %2797 = vmatpush1.bf16.msra.mxu0 %v2210
    %2798 = vmatprep.subr.bf16.mxu0 %v2219
    %2799 = vmatpush1.bf16.msra.mxu0 %v2218
    %2800 = vmatprep.subr.bf16.mxu0 %v2227
    %2801 = vmatpush1.bf16.msra.mxu0 %v2226
    %2802 = vmatprep.subr.bf16.mxu0 %v2235
    %2803 = vmatpush1.bf16.msra.mxu0 %v2234
    %2804 = vmatprep.subr.bf16.mxu0 %v2243
    %2805 = vmatpush1.bf16.msra.mxu0 %v2242
    %2806 = vmatprep.subr.bf16.mxu0 %v2251
    %2807 = vmatpush1.bf16.msra.mxu0 %v2250
    %2808 = vmatprep.subr.bf16.mxu0 %v2259
    %2809 = vmatpush1.bf16.msra.mxu0 %v2258
    %2810 = vmatprep.subr.bf16.mxu0 %v2267
    %2811 = vmatpush1.bf16.msra.mxu0 %v2266
    %2812 = vmatprep.subr.bf16.mxu0 %v2275
    %2813 = vmatpush1.bf16.msra.mxu0 %v2274
    %2814 = vmatprep.subr.bf16.mxu0 %v2283
    %2815 = vmatpush1.bf16.msra.mxu0 %v2282
    %2816 = vmatprep.subr.bf16.mxu0 %v2291
    %2817 = vmatpush1.bf16.msra.mxu0 %v2290
    %2818 = vmatprep.subr.bf16.mxu0 %v2299
    %2819 = vmatpush1.bf16.msra.mxu0 %v2298
    %2820 = vmatprep.subr.bf16.mxu0 %v2307
    %2821 = vmatpush1.bf16.msra.mxu0 %v2306
    %2822 = vmatprep.subr.bf16.mxu0 %v2315
    %2823 = vmatpush1.bf16.msra.mxu0 %v2314
    %2824 = vmatprep.subr.bf16.mxu0 %v2323
    %2825 = vmatpush1.bf16.msra.mxu0 %v2322
    %2826 = vmatprep.mubr.bf16.mxu0 %v1131
    %2827 = vmatmul.mubr.bf16.gmra.mrb[0].mxu0 %v1130
    %v2828 = vpop.f32.mrb[0].mxu0
    %v2829 = vadd.f32 %v1403, %v2828
    %v2830 = vpop.f32.mrb[0].mxu0
    %v2831 = vadd.f32 %v1407, %v2830
    %v2832 = vpop.f32.mrb[0].mxu0
    %v2833 = vpop.f32.mrb[0].mxu0
    %2834 = vdwg.mxu0
    %2835 = vmatprep.subr.bf16.mxu0 %v2331
    %2836 = vmatpush1.bf16.msra.mxu0 %v2330
    %2837 = vmatprep.subr.bf16.mxu0 %v2339
    %2838 = vmatpush1.bf16.msra.mxu0 %v2338
    %2839 = vmatprep.subr.bf16.mxu0 %v2347
    %2840 = vmatpush1.bf16.msra.mxu0 %v2346
    %2841 = vmatprep.subr.bf16.mxu0 %v2355
    %2842 = vmatpush1.bf16.msra.mxu0 %v2354
    %2843 = vmatprep.subr.bf16.mxu0 %v2363
    %2844 = vmatpush1.bf16.msra.mxu0 %v2362
    %2845 = vmatprep.subr.bf16.mxu0 %v2371
    %2846 = vmatpush1.bf16.msra.mxu0 %v2370
    %2847 = vmatprep.subr.bf16.mxu0 %v2379
    %2848 = vmatpush1.bf16.msra.mxu0 %v2378
    %2849 = vmatprep.subr.bf16.mxu0 %v2387
    %2850 = vmatpush1.bf16.msra.mxu0 %v2386
    %2851 = vmatprep.subr.bf16.mxu0 %v2395
    %2852 = vmatpush1.bf16.msra.mxu0 %v2394
    %2853 = vmatprep.subr.bf16.mxu0 %v2403
    %2854 = vmatpush1.bf16.msra.mxu0 %v2402
    %2855 = vmatprep.subr.bf16.mxu0 %v2411
    %2856 = vmatpush1.bf16.msra.mxu0 %v2410
    %2857 = vmatprep.subr.bf16.mxu0 %v2419
    %2858 = vmatpush1.bf16.msra.mxu0 %v2418
    %2859 = vmatprep.subr.bf16.mxu0 %v2427
    %2860 = vmatpush1.bf16.msra.mxu0 %v2426
    %2861 = vmatprep.subr.bf16.mxu0 %v2435
    %2862 = vmatpush1.bf16.msra.mxu0 %v2434
    %2863 = vmatprep.subr.bf16.mxu0 %v2443
    %2864 = vmatpush1.bf16.msra.mxu0 %v2442
    %2865 = vmatprep.subr.bf16.mxu0 %v2451
    %2866 = vmatpush1.bf16.msra.mxu0 %v2450
    %2867 = vmatprep.mubr.bf16.mxu0 %v1133
    %2868 = vmatmul.mubr.bf16.gmra.mrb[0].mxu0 %v1132
    %v2869 = vpop.f32.mrb[0].mxu0
    %v2870 = vadd.f32 %v2829, %v2869
    %v2871 = vpop.f32.mrb[0].mxu0
    %v2872 = vadd.f32 %v2831, %v2871
    %v2873 = vpop.f32.mrb[0].mxu0
    %v2874 = vpop.f32.mrb[0].mxu0
    %2875 = vdwg.mxu0
    %2876 = vmatprep.subr.bf16.mxu0 %v2205
    %2877 = vmatpush1.bf16.msra.mxu0 %v2204
    %2878 = vmatprep.subr.bf16.mxu0 %v2213
    %2879 = vmatpush1.bf16.msra.mxu0 %v2212
    %2880 = vmatprep.subr.bf16.mxu0 %v2221
    %2881 = vmatpush1.bf16.msra.mxu0 %v2220
    %2882 = vmatprep.subr.bf16.mxu0 %v2229
    %2883 = vmatpush1.bf16.msra.mxu0 %v2228
    %2884 = vmatprep.subr.bf16.mxu0 %v2237
    %2885 = vmatpush1.bf16.msra.mxu0 %v2236
    %2886 = vmatprep.subr.bf16.mxu0 %v2245
    %2887 = vmatpush1.bf16.msra.mxu0 %v2244
    %2888 = vmatprep.subr.bf16.mxu0 %v2253
    %2889 = vmatpush1.bf16.msra.mxu0 %v2252
    %2890 = vmatprep.subr.bf16.mxu0 %v2261
    %2891 = vmatpush1.bf16.msra.mxu0 %v2260
    %2892 = vmatprep.subr.bf16.mxu0 %v2269
    %2893 = vmatpush1.bf16.msra.mxu0 %v2268
    %2894 = vmatprep.subr.bf16.mxu0 %v2277
    %2895 = vmatpush1.bf16.msra.mxu0 %v2276
    %2896 = vmatprep.subr.bf16.mxu0 %v2285
    %2897 = vmatpush1.bf16.msra.mxu0 %v2284
    %2898 = vmatprep.subr.bf16.mxu0 %v2293
    %2899 = vmatpush1.bf16.msra.mxu0 %v2292
    %2900 = vmatprep.subr.bf16.mxu0 %v2301
    %2901 = vmatpush1.bf16.msra.mxu0 %v2300
    %2902 = vmatprep.subr.bf16.mxu0 %v2309
    %2903 = vmatpush1.bf16.msra.mxu0 %v2308
    %2904 = vmatprep.subr.bf16.mxu0 %v2317
    %2905 = vmatpush1.bf16.msra.mxu0 %v2316
    %2906 = vmatprep.subr.bf16.mxu0 %v2325
    %2907 = vmatpush1.bf16.msra.mxu0 %v2324
    %2908 = vmatprep.mubr.bf16.mxu0 %v1131
    %2909 = vmatmul.mubr.bf16.gmra.mrb[0].mxu0 %v1130
    %v2910 = vpop.f32.mrb[0].mxu0
    %v2911 = vadd.f32 %v1411, %v2910
    %v2912 = vpop.f32.mrb[0].mxu0
    %v2913 = vadd.f32 %v1415, %v2912
    %v2914 = vpop.f32.mrb[0].mxu0
    %v2915 = vpop.f32.mrb[0].mxu0
    %2916 = vdwg.mxu0
    %2917 = vmatprep.subr.bf16.mxu0 %v2333
    %2918 = vmatpush1.bf16.msra.mxu0 %v2332
    %2919 = vmatprep.subr.bf16.mxu0 %v2341
    %2920 = vmatpush1.bf16.msra.mxu0 %v2340
    %2921 = vmatprep.subr.bf16.mxu0 %v2349
    %2922 = vmatpush1.bf16.msra.mxu0 %v2348
    %2923 = vmatprep.subr.bf16.mxu0 %v2357
    %2924 = vmatpush1.bf16.msra.mxu0 %v2356
    %2925 = vmatprep.subr.bf16.mxu0 %v2365
    %2926 = vmatpush1.bf16.msra.mxu0 %v2364
    %2927 = vmatprep.subr.bf16.mxu0 %v2373
    %2928 = vmatpush1.bf16.msra.mxu0 %v2372
    %2929 = vmatprep.subr.bf16.mxu0 %v2381
    %2930 = vmatpush1.bf16.msra.mxu0 %v2380
    %2931 = vmatprep.subr.bf16.mxu0 %v2389
    %2932 = vmatpush1.bf16.msra.mxu0 %v2388
    %2933 = vmatprep.subr.bf16.mxu0 %v2397
    %2934 = vmatpush1.bf16.msra.mxu0 %v2396
    %2935 = vmatprep.subr.bf16.mxu0 %v2405
    %2936 = vmatpush1.bf16.msra.mxu0 %v2404
    %2937 = vmatprep.subr.bf16.mxu0 %v2413
    %2938 = vmatpush1.bf16.msra.mxu0 %v2412
    %2939 = vmatprep.subr.bf16.mxu0 %v2421
    %2940 = vmatpush1.bf16.msra.mxu0 %v2420
    %2941 = vmatprep.subr.bf16.mxu0 %v2429
    %2942 = vmatpush1.bf16.msra.mxu0 %v2428
    %2943 = vmatprep.subr.bf16.mxu0 %v2437
    %2944 = vmatpush1.bf16.msra.mxu0 %v2436
    %2945 = vmatprep.subr.bf16.mxu0 %v2445
    %2946 = vmatpush1.bf16.msra.mxu0 %v2444
    %2947 = vmatprep.subr.bf16.mxu0 %v2453
    %2948 = vmatpush1.bf16.msra.mxu0 %v2452
    %2949 = vmatprep.mubr.bf16.mxu0 %v1133
    %2950 = vmatmul.mubr.bf16.gmra.mrb[0].mxu0 %v1132
    %v2951 = vpop.f32.mrb[0].mxu0
    %v2952 = vadd.f32 %v2911, %v2951
    %v2953 = vpop.f32.mrb[0].mxu0
    %v2954 = vadd.f32 %v2913, %v2953
    %v2955 = vpop.f32.mrb[0].mxu0
    %v2956 = vpop.f32.mrb[0].mxu0
    %2957 = vdwg.mxu0
    %2958 = vmatprep.subr.bf16.mxu0 %v2207
    %2959 = vmatpush1.bf16.msra.mxu0 %v2206
    %2960 = vmatprep.subr.bf16.mxu0 %v2215
    %2961 = vmatpush1.bf16.msra.mxu0 %v2214
    %2962 = vmatprep.subr.bf16.mxu0 %v2223
    %2963 = vmatpush1.bf16.msra.mxu0 %v2222
    %2964 = vmatprep.subr.bf16.mxu0 %v2231
    %2965 = vmatpush1.bf16.msra.mxu0 %v2230
    %2966 = vmatprep.subr.bf16.mxu0 %v2239
    %2967 = vmatpush1.bf16.msra.mxu0 %v2238
    %2968 = vmatprep.subr.bf16.mxu0 %v2247
    %2969 = vmatpush1.bf16.msra.mxu0 %v2246
    %2970 = vmatprep.subr.bf16.mxu0 %v2255
    %2971 = vmatpush1.bf16.msra.mxu0 %v2254
    %2972 = vmatprep.subr.bf16.mxu0 %v2263
    %2973 = vmatpush1.bf16.msra.mxu0 %v2262
    %2974 = vmatprep.subr.bf16.mxu0 %v2271
    %2975 = vmatpush1.bf16.msra.mxu0 %v2270
    %2976 = vmatprep.subr.bf16.mxu0 %v2279
    %2977 = vmatpush1.bf16.msra.mxu0 %v2278
    %2978 = vmatprep.subr.bf16.mxu0 %v2287
    %2979 = vmatpush1.bf16.msra.mxu0 %v2286
    %2980 = vmatprep.subr.bf16.mxu0 %v2295
    %2981 = vmatpush1.bf16.msra.mxu0 %v2294
    %2982 = vmatprep.subr.bf16.mxu0 %v2303
    %2983 = vmatpush1.bf16.msra.mxu0 %v2302
    %2984 = vmatprep.subr.bf16.mxu0 %v2311
    %2985 = vmatpush1.bf16.msra.mxu0 %v2310
    %2986 = vmatprep.subr.bf16.mxu0 %v2319
    %2987 = vmatpush1.bf16.msra.mxu0 %v2318
    %2988 = vmatprep.subr.bf16.mxu0 %v2327
    %2989 = vmatpush1.bf16.msra.mxu0 %v2326
    %2990 = vmatprep.mubr.bf16.mxu0 %v1131
    %2991 = vmatmul.mubr.bf16.gmra.mrb[0].mxu0 %v1130
    %v2992 = vpop.f32.mrb[0].mxu0
    %v2993 = vadd.f32 %v1419, %v2992
    %v2994 = vpop.f32.mrb[0].mxu0
    %v2995 = vadd.f32 %v1423, %v2994
    %v2996 = vpop.f32.mrb[0].mxu0
    %v2997 = vpop.f32.mrb[0].mxu0
    %2998 = vdwg.mxu0
    %2999 = vmatprep.subr.bf16.mxu0 %v2335
    %3000 = vmatpush1.bf16.msra.mxu0 %v2334
    %3001 = vmatprep.subr.bf16.mxu0 %v2343
    %3002 = vmatpush1.bf16.msra.mxu0 %v2342
    %3003 = vmatprep.subr.bf16.mxu0 %v2351
    %3004 = vmatpush1.bf16.msra.mxu0 %v2350
    %3005 = vmatprep.subr.bf16.mxu0 %v2359
    %3006 = vmatpush1.bf16.msra.mxu0 %v2358
    %3007 = vmatprep.subr.bf16.mxu0 %v2367
    %3008 = vmatpush1.bf16.msra.mxu0 %v2366
    %3009 = vmatprep.subr.bf16.mxu0 %v2375
    %3010 = vmatpush1.bf16.msra.mxu0 %v2374
    %3011 = vmatprep.subr.bf16.mxu0 %v2383
    %3012 = vmatpush1.bf16.msra.mxu0 %v2382
    %3013 = vmatprep.subr.bf16.mxu0 %v2391
    %3014 = vmatpush1.bf16.msra.mxu0 %v2390
    %3015 = vmatprep.subr.bf16.mxu0 %v2399
    %3016 = vmatpush1.bf16.msra.mxu0 %v2398
    %3017 = vmatprep.subr.bf16.mxu0 %v2407
    %3018 = vmatpush1.bf16.msra.mxu0 %v2406
    %3019 = vmatprep.subr.bf16.mxu0 %v2415
    %3020 = vmatpush1.bf16.msra.mxu0 %v2414
    %3021 = vmatprep.subr.bf16.mxu0 %v2423
    %3022 = vmatpush1.bf16.msra.mxu0 %v2422
    %3023 = vmatprep.subr.bf16.mxu0 %v2431
    %3024 = vmatpush1.bf16.msra.mxu0 %v2430
    %3025 = vmatprep.subr.bf16.mxu0 %v2439
    %3026 = vmatpush1.bf16.msra.mxu0 %v2438
    %3027 = vmatprep.subr.bf16.mxu0 %v2447
    %3028 = vmatpush1.bf16.msra.mxu0 %v2446
    %3029 = vmatprep.subr.bf16.mxu0 %v2455
    %3030 = vmatpush1.bf16.msra.mxu0 %v2454
    %3031 = vmatprep.mubr.bf16.mxu0 %v1133
    %3032 = vmatmul.mubr.bf16.gmra.mrb[0].mxu0 %v1132
    %v3033 = vpop.f32.mrb[0].mxu0
    %v3034 = vadd.f32 %v2993, %v3033
    %v3035 = vpop.f32.mrb[0].mxu0
    %v3036 = vadd.f32 %v2995, %v3035
    %v3037 = vpop.f32.mrb[0].mxu0
    %v3038 = vpop.f32.mrb[0].mxu0
    %3039 = vdwg.mxu0
    %v3040 = vld [vmem:[#allocation11 + $0x1b] sm:$0xff]
    %v3041 = vld [vmem:[#allocation11 + $0x23] sm:$0xff]
    %v3042 = vrot.slane %v2788, 4
    %v3043 = vadd.f32 %v2788, %v3042
    %v3044 = vrot.slane %v3043, 2
    %v3045 = vadd.f32 %v3043, %v3044
    %v3046 = vrot.slane %v3045, 1
    %v3047 = vadd.f32 %v3045, %v3046
    %v3048 = vrot.slane %v2790, 4
    %v3049 = vadd.f32 %v2790, %v3048
    %v3050 = vrot.slane %v3049, 2
    %v3051 = vadd.f32 %v3049, %v3050
    %v3052 = vrot.slane %v3051, 1
    %v3053 = vadd.f32 %v3051, %v3052
    %v3054 = vrot.slane %v2870, 4
    %v3055 = vadd.f32 %v2870, %v3054
    %v3056 = vrot.slane %v3055, 2
    %v3057 = vadd.f32 %v3055, %v3056
    %v3058 = vrot.slane %v3057, 1
    %v3059 = vadd.f32 %v3057, %v3058
    %v3060 = vrot.slane %v2872, 4
    %v3061 = vadd.f32 %v2872, %v3060
    %v3062 = vrot.slane %v3061, 2
    %v3063 = vadd.f32 %v3061, %v3062
    %v3064 = vrot.slane %v3063, 1
    %v3065 = vadd.f32 %v3063, %v3064
    %v3066 = vrot.slane %v2952, 4
    %v3067 = vadd.f32 %v2952, %v3066
    %v3068 = vrot.slane %v3067, 2
    %v3069 = vadd.f32 %v3067, %v3068
    %v3070 = vrot.slane %v3069, 1
    %v3071 = vadd.f32 %v3069, %v3070
    %v3072 = vrot.slane %v2954, 4
    %v3073 = vadd.f32 %v2954, %v3072
    %v3074 = vrot.slane %v3073, 2
    %v3075 = vadd.f32 %v3073, %v3074
    %v3076 = vrot.slane %v3075, 1
    %v3077 = vadd.f32 %v3075, %v3076
    %v3078 = vrot.slane %v3034, 4
    %v3079 = vadd.f32 %v3034, %v3078
    %v3080 = vrot.slane %v3079, 2
    %v3081 = vadd.f32 %v3079, %v3080
    %v3082 = vrot.slane %v3081, 1
    %v3083 = vadd.f32 %v3081, %v3082
    %v3084 = vrot.slane %v3036, 4
    %v3085 = vadd.f32 %v3036, %v3084
    %v3086 = vrot.slane %v3085, 2
    %v3087 = vadd.f32 %v3085, %v3086
    %v3088 = vrot.slane %v3087, 1
    %v3089 = vadd.f32 %v3087, %v3088
    %v3090 = vmul.f32 %v3047, %v337
    %v3091 = vmul.f32 %v3053, %v337
    %v3092 = vmul.f32 %v3059, %v337
    %v3093 = vmul.f32 %v3065, %v337
    %v3094 = vmul.f32 %v3071, %v337
    %v3095 = vmul.f32 %v3077, %v337
    %v3096 = vmul.f32 %v3083, %v337
    %v3097 = vmul.f32 %v3089, %v337
    %v3098 = vmul.f32 %v2788, %v2788
    %v3099 = vmul.f32 %v2790, %v2790
    %v3100 = vmul.f32 %v2870, %v2870
    %v3101 = vmul.f32 %v2872, %v2872
    %v3102 = vmul.f32 %v2952, %v2952
    %v3103 = vmul.f32 %v2954, %v2954
    %v3104 = vmul.f32 %v3034, %v3034
    %v3105 = vmul.f32 %v3036, %v3036
    %v3106 = vrot.slane %v3098, 4
    %v3107 = vadd.f32 %v3098, %v3106
    %v3108 = vrot.slane %v3107, 2
    %v3109 = vadd.f32 %v3107, %v3108
    %v3110 = vrot.slane %v3109, 1
    %v3111 = vadd.f32 %v3109, %v3110
    %v3112 = vrot.slane %v3099, 4
    %v3113 = vadd.f32 %v3099, %v3112
    %v3114 = vrot.slane %v3113, 2
    %v3115 = vadd.f32 %v3113, %v3114
    %v3116 = vrot.slane %v3115, 1
    %v3117 = vadd.f32 %v3115, %v3116
    %v3118 = vrot.slane %v3100, 4
    %v3119 = vadd.f32 %v3100, %v3118
    %v3120 = vrot.slane %v3119, 2
    %v3121 = vadd.f32 %v3119, %v3120
    %v3122 = vrot.slane %v3121, 1
    %v3123 = vadd.f32 %v3121, %v3122
    %v3124 = vrot.slane %v3101, 4
    %v3125 = vadd.f32 %v3101, %v3124
    %v3126 = vrot.slane %v3125, 2
    %v3127 = vadd.f32 %v3125, %v3126
    %v3128 = vrot.slane %v3127, 1
    %v3129 = vadd.f32 %v3127, %v3128
    %v3130 = vrot.slane %v3102, 4
    %v3131 = vadd.f32 %v3102, %v3130
    %v3132 = vrot.slane %v3131, 2
    %v3133 = vadd.f32 %v3131, %v3132
    %v3134 = vrot.slane %v3133, 1
    %v3135 = vadd.f32 %v3133, %v3134
    %v3136 = vrot.slane %v3103, 4
    %v3137 = vadd.f32 %v3103, %v3136
    %v3138 = vrot.slane %v3137, 2
    %v3139 = vadd.f32 %v3137, %v3138
    %v3140 = vrot.slane %v3139, 1
    %v3141 = vadd.f32 %v3139, %v3140
    %v3142 = vrot.slane %v3104, 4
    %v3143 = vadd.f32 %v3104, %v3142
    %v3144 = vrot.slane %v3143, 2
    %v3145 = vadd.f32 %v3143, %v3144
    %v3146 = vrot.slane %v3145, 1
    %v3147 = vadd.f32 %v3145, %v3146
    %v3148 = vrot.slane %v3105, 4
    %v3149 = vadd.f32 %v3105, %v3148
    %v3150 = vrot.slane %v3149, 2
    %v3151 = vadd.f32 %v3149, %v3150
    %v3152 = vrot.slane %v3151, 1
    %v3153 = vadd.f32 %v3151, %v3152
    %v3154 = vmul.f32 %v3111, %v337
    %v3155 = vmul.f32 %v3117, %v337
    %v3156 = vmul.f32 %v3123, %v337
    %v3157 = vmul.f32 %v3129, %v337
    %v3158 = vmul.f32 %v3135, %v337
    %v3159 = vmul.f32 %v3141, %v337
    %v3160 = vmul.f32 %v3147, %v337
    %v3161 = vmul.f32 %v3153, %v337
    %v3162 = vmul.f32 %v3090, %v3090
    %v3163 = vmul.f32 %v3091, %v3091
    %v3164 = vmul.f32 %v3092, %v3092
    %v3165 = vmul.f32 %v3093, %v3093
    %v3166 = vmul.f32 %v3094, %v3094
    %v3167 = vmul.f32 %v3095, %v3095
    %v3168 = vmul.f32 %v3096, %v3096
    %v3169 = vmul.f32 %v3097, %v3097
    %v3170 = vsub.f32 %v3154, %v3162
    %v3171 = vsub.f32 %v3155, %v3163
    %v3172 = vsub.f32 %v3156, %v3164
    %v3173 = vsub.f32 %v3157, %v3165
    %v3174 = vsub.f32 %v3158, %v3166
    %v3175 = vsub.f32 %v3159, %v3167
    %v3176 = vsub.f32 %v3160, %v3168
    %v3177 = vsub.f32 %v3161, %v3169
    %v3178 = vmax.f32 %v3170, 0.0
    %v3179 = vmax.f32 %v3171, 0.0
    %v3180 = vmax.f32 %v3172, 0.0
    %v3181 = vmax.f32 %v3173, 0.0
    %v3182 = vmax.f32 %v3174, 0.0
    %v3183 = vmax.f32 %v3175, 0.0
    %v3184 = vmax.f32 %v3176, 0.0
    %v3185 = vmax.f32 %v3177, 0.0
    %v3186 = vadd.f32 %v3178, 1e-05
    %v3187 = vadd.f32 %v3179, 1e-05
    %v3188 = vadd.f32 %v3180, 1e-05
    %v3189 = vadd.f32 %v3181, 1e-05
    %v3190 = vadd.f32 %v3182, 1e-05
    %v3191 = vadd.f32 %v3183, 1e-05
    %v3192 = vadd.f32 %v3184, 1e-05
    %v3193 = vadd.f32 %v3185, 1e-05
    %v3194 = vrsqrt.pop %v3186
    %v3195 = vrsqrt.pop %v3187
    %v3196 = vrsqrt.pop %v3188
    %v3197 = vrsqrt.pop %v3189
    %v3198 = vrsqrt.pop %v3190
    %v3199 = vrsqrt.pop %v3191
    %v3200 = vrsqrt.pop %v3192
    %v3201 = vrsqrt.pop %v3193
    %v3210 = vcombine.low %v3194, %v3195
    %v3211 = vcombine.low %v3196, %v3197
    %v3212 = vcombine.low %v3198, %v3199
    %v3213 = vcombine.low %v3200, %v3201
    %v3215 = vunpack.c.l.s4 1966171168
    %v3216 = vunpack.c.0.s8 %v3215
    %v3217 = vlaneseq
    %v3218 = vshrl.u32 %v3217, 7
    %v3219 = vsub.s32 %v3216, %v3218
    %v3220 = vrot.slane %v3210, %v3219
    %v3222 = vunpack.c.l.s4 1966171168
    %v3223 = vunpack.c.0.s8 %v3222
    %v3224 = vlaneseq
    %v3225 = vshrl.u32 %v3224, 7
    %v3226 = vsub.s32 %v3223, %v3225
    %v3227 = vrot.slane %v3211, %v3226
    %v3229 = vunpack.c.l.s4 1966171168
    %v3230 = vunpack.c.0.s8 %v3229
    %v3231 = vlaneseq
    %v3232 = vshrl.u32 %v3231, 7
    %v3233 = vsub.s32 %v3230, %v3232
    %v3234 = vrot.slane %v3212, %v3233
    %v3236 = vunpack.c.l.s4 1966171168
    %v3237 = vunpack.c.0.s8 %v3236
    %v3238 = vlaneseq
    %v3239 = vshrl.u32 %v3238, 7
    %v3240 = vsub.s32 %v3237, %v3239
    %v3241 = vrot.slane %v3213, %v3240
    %v3242 = vcombine.low %v3220, %v3227
    %v3243 = vcombine.low %v3234, %v3241
    %v3245 = vunpack.c.l.s4 1966171168
    %v3246 = vunpack.c.0.s8 %v3245
    %v3247 = vlaneseq
    %v3248 = vshrl.u32 %v3247, 7
    %v3249 = vsub.s32 %v3246, %v3248
    %v3250 = vrot.slane %v3242, %v3249
    %v3252 = vunpack.c.l.s4 1966171168
    %v3253 = vunpack.c.0.s8 %v3252
    %v3254 = vlaneseq
    %v3255 = vshrl.u32 %v3254, 7
    %v3256 = vsub.s32 %v3253, %v3255
    %v3257 = vrot.slane %v3243, %v3256
    %v3258 = vcombine.low %v3250, %v3257
    %v3260 = vmul.f32 %v3040, %v3258
    %v3262 = vlaneseq
    %v3263 = vshrl.u32 %v3262, 7
    %v3264 = vsub.s32 0, %v3263
    %v3265 = vrot.slane %v3260, %v3264
    %v3266 = vlaneseq
    %v3267 = vshrl.u32 %v3266, 7
    %v3268 = vsub.s32 1, %v3267
    %v3269 = vrot.slane %v3260, %v3268
    %v3270 = vlaneseq
    %v3271 = vshrl.u32 %v3270, 7
    %v3272 = vsub.s32 2, %v3271
    %v3273 = vrot.slane %v3260, %v3272
    %v3274 = vlaneseq
    %v3275 = vshrl.u32 %v3274, 7
    %v3276 = vsub.s32 3, %v3275
    %v3277 = vrot.slane %v3260, %v3276
    %v3278 = vlaneseq
    %v3279 = vshrl.u32 %v3278, 7
    %v3280 = vsub.s32 4, %v3279
    %v3281 = vrot.slane %v3260, %v3280
    %v3282 = vlaneseq
    %v3283 = vshrl.u32 %v3282, 7
    %v3284 = vsub.s32 5, %v3283
    %v3285 = vrot.slane %v3260, %v3284
    %v3286 = vlaneseq
    %v3287 = vshrl.u32 %v3286, 7
    %v3288 = vsub.s32 6, %v3287
    %v3289 = vrot.slane %v3260, %v3288
    %v3290 = vlaneseq
    %v3291 = vshrl.u32 %v3290, 7
    %v3292 = vsub.s32 7, %v3291
    %v3293 = vrot.slane %v3260, %v3292
    %v3302 = vmul.f32 %v3090, %v3265
    %v3303 = vmul.f32 %v3091, %v3269
    %v3304 = vmul.f32 %v3092, %v3273
    %v3305 = vmul.f32 %v3093, %v3277
    %v3306 = vmul.f32 %v3094, %v3281
    %v3307 = vmul.f32 %v3095, %v3285
    %v3308 = vmul.f32 %v3096, %v3289
    %v3309 = vmul.f32 %v3097, %v3293
    %v3318 = vcombine.low %v3302, %v3303
    %v3319 = vcombine.low %v3304, %v3305
    %v3320 = vcombine.low %v3306, %v3307
    %v3321 = vcombine.low %v3308, %v3309
    %v3323 = vunpack.c.l.s4 1966171168
    %v3324 = vunpack.c.0.s8 %v3323
    %v3325 = vlaneseq
    %v3326 = vshrl.u32 %v3325, 7
    %v3327 = vsub.s32 %v3324, %v3326
    %v3328 = vrot.slane %v3318, %v3327
    %v3330 = vunpack.c.l.s4 1966171168
    %v3331 = vunpack.c.0.s8 %v3330
    %v3332 = vlaneseq
    %v3333 = vshrl.u32 %v3332, 7
    %v3334 = vsub.s32 %v3331, %v3333
    %v3335 = vrot.slane %v3319, %v3334
    %v3337 = vunpack.c.l.s4 1966171168
    %v3338 = vunpack.c.0.s8 %v3337
    %v3339 = vlaneseq
    %v3340 = vshrl.u32 %v3339, 7
    %v3341 = vsub.s32 %v3338, %v3340
    %v3342 = vrot.slane %v3320, %v3341
    %v3344 = vunpack.c.l.s4 1966171168
    %v3345 = vunpack.c.0.s8 %v3344
    %v3346 = vlaneseq
    %v3347 = vshrl.u32 %v3346, 7
    %v3348 = vsub.s32 %v3345, %v3347
    %v3349 = vrot.slane %v3321, %v3348
    %v3350 = vcombine.low %v3328, %v3335
    %v3351 = vcombine.low %v3342, %v3349
    %v3353 = vunpack.c.l.s4 1966171168
    %v3354 = vunpack.c.0.s8 %v3353
    %v3355 = vlaneseq
    %v3356 = vshrl.u32 %v3355, 7
    %v3357 = vsub.s32 %v3354, %v3356
    %v3358 = vrot.slane %v3350, %v3357
    %v3360 = vunpack.c.l.s4 1966171168
    %v3361 = vunpack.c.0.s8 %v3360
    %v3362 = vlaneseq
    %v3363 = vshrl.u32 %v3362, 7
    %v3364 = vsub.s32 %v3361, %v3363
    %v3365 = vrot.slane %v3351, %v3364
    %v3366 = vcombine.low %v3358, %v3365
    %v3368 = vsub.f32 %v3041, %v3366
    %v3369 = vmul.f32 %v2788, %v3265
    %v3370 = vmul.f32 %v2790, %v3269
    %v3371 = vmul.f32 %v2870, %v3273
    %v3372 = vmul.f32 %v2872, %v3277
    %v3373 = vmul.f32 %v2952, %v3281
    %v3374 = vmul.f32 %v2954, %v3285
    %v3375 = vmul.f32 %v3034, %v3289
    %v3376 = vmul.f32 %v3036, %v3293
    %v3378 = vlaneseq
    %v3379 = vshrl.u32 %v3378, 7
    %v3380 = vsub.s32 0, %v3379
    %v3381 = vrot.slane %v3368, %v3380
    %v3382 = vlaneseq
    %v3383 = vshrl.u32 %v3382, 7
    %v3384 = vsub.s32 1, %v3383
    %v3385 = vrot.slane %v3368, %v3384
    %v3386 = vlaneseq
    %v3387 = vshrl.u32 %v3386, 7
    %v3388 = vsub.s32 2, %v3387
    %v3389 = vrot.slane %v3368, %v3388
    %v3390 = vlaneseq
    %v3391 = vshrl.u32 %v3390, 7
    %v3392 = vsub.s32 3, %v3391
    %v3393 = vrot.slane %v3368, %v3392
    %v3394 = vlaneseq
    %v3395 = vshrl.u32 %v3394, 7
    %v3396 = vsub.s32 4, %v3395
    %v3397 = vrot.slane %v3368, %v3396
    %v3398 = vlaneseq
    %v3399 = vshrl.u32 %v3398, 7
    %v3400 = vsub.s32 5, %v3399
    %v3401 = vrot.slane %v3368, %v3400
    %v3402 = vlaneseq
    %v3403 = vshrl.u32 %v3402, 7
    %v3404 = vsub.s32 6, %v3403
    %v3405 = vrot.slane %v3368, %v3404
    %v3406 = vlaneseq
    %v3407 = vshrl.u32 %v3406, 7
    %v3408 = vsub.s32 7, %v3407
    %v3409 = vrot.slane %v3368, %v3408
    %v3418 = vadd.f32 %v3369, %v3381
    %v3419 = vadd.f32 %v3370, %v3385
    %v3420 = vadd.f32 %v3371, %v3389
    %v3421 = vadd.f32 %v3372, %v3393
    %v3422 = vadd.f32 %v3373, %v3397
    %v3423 = vadd.f32 %v3374, %v3401
    %v3424 = vadd.f32 %v3375, %v3405
    %v3425 = vadd.f32 %v3376, %v3409
    %v3426 = vmul.f32 %v3418, 0.2
    %v3427 = vmul.f32 %v3419, 0.2
    %v3428 = vmul.f32 %v3420, 0.2
    %v3429 = vmul.f32 %v3421, 0.2
    %v3430 = vmul.f32 %v3422, 0.2
    %v3431 = vmul.f32 %v3423, 0.2
    %v3432 = vmul.f32 %v3424, 0.2
    %v3433 = vmul.f32 %v3425, 0.2
    %v3434 = vmax.f32 %v3418, %v3426
    %v3435 = vmax.f32 %v3419, %v3427
    %v3436 = vmax.f32 %v3420, %v3428
    %v3437 = vmax.f32 %v3421, %v3429
    %v3438 = vmax.f32 %v3422, %v3430
    %v3439 = vmax.f32 %v3423, %v3431
    %v3440 = vmax.f32 %v3424, %v3432
    %v3441 = vmax.f32 %v3425, %v3433
    %v3442 = vpack.c.bf16 %v3434, %v3434
    %v3443 = vpack.c.bf16 %v3435, %v3435
    %v3444 = vpack.c.bf16 %v3436, %v3436
    %v3445 = vpack.c.bf16 %v3437, %v3437
    %v3446 = vpack.c.bf16 %v3438, %v3438
    %v3447 = vpack.c.bf16 %v3439, %v3439
    %v3448 = vpack.c.bf16 %v3440, %v3440
    %v3449 = vpack.c.bf16 %v3441, %v3441
    %v3458 = vunpack.c.l.b16 %v3442
    %v3459 = vunpack.c.l.b16 %v3443
    %v3460 = vunpack.c.l.b16 %v3444
    %v3461 = vunpack.c.l.b16 %v3445
    %v3462 = vunpack.c.l.b16 %v3446
    %v3463 = vunpack.c.l.b16 %v3447
    %v3464 = vunpack.c.l.b16 %v3448
    %v3465 = vunpack.c.l.b16 %v3449
    %v3466 = vpack.c.b16 %v3459, %v3458
    %v3467 = vpack.c.b16 %v3461, %v3460
    %v3468 = vpack.c.b16 %v3463, %v3462
    %v3469 = vpack.c.b16 %v3465, %v3464
    %3474 = vst [vmem:[#allocation13] sm:$0xff] %v3466
    %3475 = vst [vmem:[#allocation13 + $0x8] sm:$0xff] %v3467
    %3476 = vst [vmem:[#allocation13 + $0x10] sm:$0xff] %v3468
    %3477 = vst [vmem:[#allocation13 + $0x18] sm:$0xff] %v3469
    // Predicated region
    $region50: #{tpu_custom_call.1} parent=1 // pred_check
      _
    $region51: #{tpu_custom_call.1} parent=1 // pred_check_branch
      %3479 = sbr.rel (0) target = $region53
    $region52: #{tpu_custom_call.1} parent=1 // pred_region
      %s3481 = ssub.s32 512, 512
      %3482 = vsyncadd [#allocation4], %s3481
      %s3484 = sshll.u32 [#allocation13], 4
      %s3485 = int_to_ptr.vmem [resolvable:$true] %s3484
      %3487 = dma.vmem_to_hbm [thread:$0]  %s3485, 512, %s6, [#allocation4]
    $region53: #{tpu_custom_call.1} parent=1 // pred_fallthru
      _
    // Predicated region
    $region54: #{tpu_custom_call.1} parent=1 // pred_check
      _
    $region55: #{tpu_custom_call.1} parent=1 // pred_check_branch
      %3489 = sbr.rel (0) target = $region57
    $region56: #{tpu_custom_call.1} parent=1 // pred_region
      %3490 = dma.done [#allocation4], 512
    $region57: #{tpu_custom_call.1} parent=1 // pred_fallthru
      _
    %3491 = vsyncpa [#allocation3], 1
    %3492 = vsyncpa [#allocation6], 1
    %3493 = vsyncpa [#allocation9], 1
    %3494 = vsyncpa [#allocation12], 1
    %3495 = vsyncpa [#allocation4], 1

</llo_original>
